<compile_context>
chip_gen: v7x
topology: tpu7x:2x2x1
jax: 0.10.0
libtpu: 0.0.40
codegen_flags: <defaults>
</compile_context>

<pallas_src>
import jax
import jax.numpy as jnp
from jax.experimental import pallas as pl
from jax.experimental.pallas import tpu as pltpu


def _round_up(x, m):
    return (x + m - 1) // m * m


def _pick_row_block(r_out_pad, max_rows=128):
    """Largest multiple of 8 <= max_rows that divides r_out_pad (>= 8)."""
    for cand in range(min(max_rows, r_out_pad), 7, -8):
        if r_out_pad % cand == 0:
            return cand
    return 8


# ----------------------------- Pallas kernel --------------------------------
def _make_conv_bn_silu_kernel(tap_offsets, r_blk):
    """Kernel for a fixed set of (kh, kw) flattened-row tap offsets."""

    def kernel(x_ref, w_ref, b_ref, o_ref):
        # x_ref: (1, R_in_pad, Cin)  flattened, zero-padded NHWC image (resident per n)
        # w_ref: (T, Cin, tn)        per-tap weight slabs, BN scale folded in
        # b_ref: (1, tn)             fused BN bias (f32)
        # o_ref: (1, r_blk, tn)      output row strip
        r0 = pl.program_id(2) * r_blk
        acc = None
        for t, off in enumerate(tap_offsets):
            start = r0 + off
            if off % 8 == 0 and r_blk % 8 == 0:
                start = pl.multiple_of(start, 8)
            lhs = x_ref[0, pl.ds(start, r_blk), :]                 # (r_blk, Cin)
            contrib = jnp.dot(lhs, w_ref[t],
                              preferred_element_type=jnp.float32)  # vreg accumulate
            acc = contrib if acc is None else acc + contrib
        y = acc + b_ref[...].astype(jnp.float32)                   # + fused BN bias
        # SiLU via tanh (one EUP push): y*sigmoid(y) == 0.5*y*(1 + tanh(0.5*y))
        o_ref[0] = (0.5 * y * (1.0 + jnp.tanh(0.5 * y))).astype(o_ref.dtype)

    return kernel


# ------------------------------- wrappers ------------------------------------
def conv_bn_silu_nhwc(x_nhwc, weight, gamma, beta, running_mean, running_var,
                      *, k=3, s=1, p=None, d=1, g=1, eps=1e-3,
                      io_dtype=None, max_row_block=128):
    """Forward of the PyTorch `Conv` module on NHWC input / NHWC output."""
    assert s == 1 and d == 1 and g == 1, "kernel covers the default s=1,d=1,g=1 case"
    N, H, W, Cin = x_nhwc.shape
    Cout, Cin_w, KH, KW = weight.shape
    assert Cin_w == Cin and KH == k and KW == k
    if p is None:
        p = k // 2                      # pad() helper semantics for d=1
    out_dtype = x_nhwc.dtype
    if io_dtype is None:
        io_dtype = x_nhwc.dtype

    Hp, Wp = H + 2 * p, W + 2 * p       # padded spatial dims
    Ho, Wo = Hp - k + 1, Wp - k + 1     # output spatial dims (== H, W for k=3,p=1)
    T = k * k

    # Sublane-aligned padded row width so kh*Wp_pad tap offsets land on sublane 0.
    Wp_pad = _round_up(Wp, 8)

    # Zero-pad spatially, then flatten spatial dims (pure reshape, no im2col).
    x_pad = jnp.pad(x_nhwc, ((0, 0), (p, p), (p, p + (Wp_pad - Wp)), (0, 0)))
    x_flat = x_pad.reshape(N, Hp * Wp_pad, Cin).astype(io_dtype)

    R_out = Ho * Wp_pad                 # flattened output rows per image
    R_out_pad = _round_up(R_out, 8)
    r_blk = _pick_row_block(R_out_pad, max_row_block)
    R_tiles = R_out_pad // r_blk

    tap_offsets = [kh * Wp_pad + kw for kh in range(k) for kw in range(k)]
    # Valid outputs (row < Ho*Wp_pad, column < Wo) only ever read rows of the
    # genuine zero-padded image; other k/p choices must keep this property.
    assert (Ho - 1) * Wp_pad + (Wo - 1) + tap_offsets[-1] < Hp * Wp_pad
    # Garbage / padding rows may over-read: make sure the over-read hits zeros.
    R_in_pad = _round_up(max(Hp * Wp_pad, R_out_pad + tap_offsets[-1]), 8)
    assert R_in_pad >= R_out_pad + tap_offsets[-1]
    if R_in_pad > Hp * Wp_pad:
        x_flat = jnp.pad(x_flat, ((0, 0), (0, R_in_pad - Hp * Wp_pad), (0, 0)))

    # Eval-mode BatchNorm folded: scale into weights (exact), bias separate.
    scale = gamma / jnp.sqrt(running_var + eps)           # (Cout,)
    bias = beta - running_mean * scale                     # (Cout,)
    w_slabs = jnp.transpose(weight, (2, 3, 1, 0)).reshape(T, Cin, Cout)
    w_slabs = w_slabs * scale[None, None, :]

    # Lane tiling of output channels: 128-wide tiles at production Cout, natural
    # width for tiny layers (masked stores beat a 16x padding bandwidth tax).
    if Cout >= 128:
        tn = 128
        Cout_pad = _round_up(Cout, tn)
    else:
        tn = Cout
        Cout_pad = Cout
    if Cout_pad > Cout:
        w_slabs = jnp.pad(w_slabs, ((0, 0), (0, 0), (0, Cout_pad - Cout)))
        bias = jnp.pad(bias, (0, Cout_pad - Cout))
    w_slabs = w_slabs.astype(io_dtype)
    bias2d = bias.reshape(1, Cout_pad).astype(jnp.float32)

    kernel = _make_conv_bn_silu_kernel(tap_offsets, r_blk)

    # VMEM budget from actual block sizes (double-buffered), v7x-safe cap.
    isz = jnp.dtype(io_dtype).itemsize
    osz = jnp.dtype(out_dtype).itemsize
    est_block_bytes = (R_in_pad * Cin * isz + T * Cin * tn * isz
                       + tn * 4 + r_blk * tn * osz)
    vmem_limit = int(min(48 * 1024 * 1024, max(16 * 1024 * 1024, 4 * est_block_bytes)))

    out = pl.pallas_call(
        kernel,
        out_shape=jax.ShapeDtypeStruct((N, R_out_pad, Cout_pad), out_dtype),
        grid_spec=pltpu.PrefetchScalarGridSpec(
            num_scalar_prefetch=0,
            grid=(N, Cout_pad // tn, R_tiles),   # row strips innermost
            in_specs=[
                pl.BlockSpec((1, R_in_pad, Cin), lambda n, j, r: (n, 0, 0)),
                pl.BlockSpec((T, Cin, tn), lambda n, j, r: (0, 0, j)),
                pl.BlockSpec((1, tn), lambda n, j, r: (0, j)),
            ],
            out_specs=pl.BlockSpec((1, r_blk, tn), lambda n, j, r: (n, r, j)),
        ),
        compiler_params=pltpu.CompilerParams(
            dimension_semantics=("parallel", "parallel", "parallel"),
            vmem_limit_bytes=vmem_limit,
        ),
    )(x_flat, w_slabs, bias2d)

    # Drop row padding, the wrap-around columns, and channel padding.
    out = out[:, :R_out, :Cout].reshape(N, Ho, Wp_pad, Cout)[:, :, :Wo, :]
    return out  # NHWC


def conv_bn_silu(x_nchw, weight, gamma, beta, running_mean, running_var, **kw):
    """NCHW interface matching the PyTorch module (transposes are glue only)."""
    x_nhwc = jnp.transpose(x_nchw, (0, 2, 3, 1))
    y = conv_bn_silu_nhwc(x_nhwc, weight, gamma, beta, running_mean, running_var, **kw)
    return jnp.transpose(y, (0, 3, 1, 2))


# ------------------------------ reference ------------------------------------
def conv_bn_silu_ref(x_nchw, weight, gamma, beta, running_mean, running_var,
                     *, p=1, eps=1e-3):
    y = jax.lax.conv_general_dilated(
        x_nchw, weight, window_strides=(1, 1), padding=[(p, p), (p, p)],
        dimension_numbers=("NCHW", "OIHW", "NCHW"))
    scale = gamma / jnp.sqrt(running_var + eps)
    bias = beta - running_mean * scale
    y = y * scale[None, :, None, None] + bias[None, :, None, None]
    return y * jax.nn.sigmoid(y)


if __name__ == "__main__":
    # Small shapes consistent with the module: Conv(in_ch=4, out_ch=8, k=3)
    N, Cin, H, W = 2, 4, 16, 16
    Cout, K = 8, 3

    key = jax.random.PRNGKey(0)
    kx, kw, kg, kb, km, kv = jax.random.split(key, 6)

    x = jax.random.normal(kx, (N, Cin, H, W), dtype=jnp.float32)
    weight = 0.1 * jax.random.normal(kw, (Cout, Cin, K, K), dtype=jnp.float32)
    gamma = 1.0 + 0.1 * jax.random.normal(kg, (Cout,), dtype=jnp.float32)
    beta = 0.1 * jax.random.normal(kb, (Cout,), dtype=jnp.float32)
    running_mean = 0.1 * jax.random.normal(km, (Cout,), dtype=jnp.float32)
    running_var = 1.0 + 0.1 * jnp.abs(jax.random.normal(kv, (Cout,), dtype=jnp.float32))

    out = conv_bn_silu(x, weight, gamma, beta, running_mean, running_var)
    out = jax.block_until_ready(out)

    ref = conv_bn_silu_ref(x, weight, gamma, beta, running_mean, running_var)
    assert out.shape == (N, Cout, H, W)
    assert jnp.allclose(out, ref, atol=1e-4, rtol=1e-4)
    print("KERNEL_OK")
</pallas_src>

<mosaic_0001>
module attributes {stable_mosaic.version = 11 : i64} {
  func.func @kernel(%arg0: i32, %arg1: i32, %arg2: i32, %arg3: memref<1x440x4xf32, #tpu.memory_space<vmem>>, %arg4: memref<9x4x8xf32, #tpu.memory_space<vmem>>, %arg5: memref<1x8xf32, #tpu.memory_space<vmem>>, %arg6: memref<1x128x8xf32, #tpu.memory_space<vmem>>) attributes {dimension_semantics = [#tpu.dimension_semantics<parallel>, #tpu.dimension_semantics<parallel>, #tpu.dimension_semantics<parallel>], iteration_bounds = array<i64: 2, 1, 3>, scalar_prefetch = 0 : i64, scratch_operands = 0 : i64, tpu.core_type = #tpu.core_type<tc>, window_params = [{transform_indices = @transform_0, window_bounds = array<i64: 1, 440, 4>}, {transform_indices = @transform_1, window_bounds = array<i64: 9, 4, 8>}, {transform_indices = @transform_2, window_bounds = array<i64: 1, 8>}, {transform_indices = @transform_3, window_bounds = array<i64: 1, 128, 8>}]} {
    %c128_i32 = arith.constant 128 : i32
    %0 = arith.muli %arg2, %c128_i32 : i32
    %c0_i32 = arith.constant 0 : i32
    %1 = arith.addi %0, %c0_i32 : i32
    %2 = tpu.assume_multiple %1, 8 : i32
    %c0 = arith.constant 0 : index
    %3 = arith.index_cast %2 : i32 to index
    %c0_0 = arith.constant 0 : index
    %4 = vector.load %arg3[%c0, %3, %c0_0] : memref<1x440x4xf32, #tpu.memory_space<vmem>>, vector<1x128x4xf32>
    %5 = vector.shape_cast %4 : vector<1x128x4xf32> to vector<128x4xf32>
    %c0_1 = arith.constant 0 : index
    %c0_2 = arith.constant 0 : index
    %c0_3 = arith.constant 0 : index
    %6 = vector.load %arg4[%c0_1, %c0_2, %c0_3] : memref<9x4x8xf32, #tpu.memory_space<vmem>>, vector<1x4x8xf32>
    %7 = vector.shape_cast %6 : vector<1x4x8xf32> to vector<4x8xf32>
    %cst = arith.constant dense<0.000000e+00> : vector<128x8xf32>
    %8 = tpu.matmul %5, %7, %cst {dimension_numbers = #tpu.dot_dimension_numbers<[1], [0], [0], [1], [0, 0, 1, 1], [], []>} : vector<128x4xf32>, vector<4x8xf32>, vector<128x8xf32> -> vector<128x8xf32>
    %c1_i32 = arith.constant 1 : i32
    %9 = arith.addi %0, %c1_i32 : i32
    %c0_4 = arith.constant 0 : index
    %10 = arith.index_cast %9 : i32 to index
    %c0_5 = arith.constant 0 : index
    %11 = vector.load %arg3[%c0_4, %10, %c0_5] : memref<1x440x4xf32, #tpu.memory_space<vmem>>, vector<1x128x4xf32>
    %12 = vector.shape_cast %11 : vector<1x128x4xf32> to vector<128x4xf32>
    %c1 = arith.constant 1 : index
    %c0_6 = arith.constant 0 : index
    %c0_7 = arith.constant 0 : index
    %13 = vector.load %arg4[%c1, %c0_6, %c0_7] : memref<9x4x8xf32, #tpu.memory_space<vmem>>, vector<1x4x8xf32>
    %14 = vector.shape_cast %13 : vector<1x4x8xf32> to vector<4x8xf32>
    %cst_8 = arith.constant dense<0.000000e+00> : vector<128x8xf32>
    %15 = tpu.matmul %12, %14, %cst_8 {dimension_numbers = #tpu.dot_dimension_numbers<[1], [0], [0], [1], [0, 0, 1, 1], [], []>} : vector<128x4xf32>, vector<4x8xf32>, vector<128x8xf32> -> vector<128x8xf32>
    %16 = arith.addf %8, %15 : vector<128x8xf32>
    %c2_i32 = arith.constant 2 : i32
    %17 = arith.addi %0, %c2_i32 : i32
    %c0_9 = arith.constant 0 : index
    %18 = arith.index_cast %17 : i32 to index
    %c0_10 = arith.constant 0 : index
    %19 = vector.load %arg3[%c0_9, %18, %c0_10] : memref<1x440x4xf32, #tpu.memory_space<vmem>>, vector<1x128x4xf32>
    %20 = vector.shape_cast %19 : vector<1x128x4xf32> to vector<128x4xf32>
    %c2 = arith.constant 2 : index
    %c0_11 = arith.constant 0 : index
    %c0_12 = arith.constant 0 : index
    %21 = vector.load %arg4[%c2, %c0_11, %c0_12] : memref<9x4x8xf32, #tpu.memory_space<vmem>>, vector<1x4x8xf32>
    %22 = vector.shape_cast %21 : vector<1x4x8xf32> to vector<4x8xf32>
    %cst_13 = arith.constant dense<0.000000e+00> : vector<128x8xf32>
    %23 = tpu.matmul %20, %22, %cst_13 {dimension_numbers = #tpu.dot_dimension_numbers<[1], [0], [0], [1], [0, 0, 1, 1], [], []>} : vector<128x4xf32>, vector<4x8xf32>, vector<128x8xf32> -> vector<128x8xf32>
    %24 = arith.addf %16, %23 : vector<128x8xf32>
    %c24_i32 = arith.constant 24 : i32
    %25 = arith.addi %0, %c24_i32 : i32
    %26 = tpu.assume_multiple %25, 8 : i32
    %c0_14 = arith.constant 0 : index
    %27 = arith.index_cast %26 : i32 to index
    %c0_15 = arith.constant 0 : index
    %28 = vector.load %arg3[%c0_14, %27, %c0_15] : memref<1x440x4xf32, #tpu.memory_space<vmem>>, vector<1x128x4xf32>
    %29 = vector.shape_cast %28 : vector<1x128x4xf32> to vector<128x4xf32>
    %c3 = arith.constant 3 : index
    %c0_16 = arith.constant 0 : index
    %c0_17 = arith.constant 0 : index
    %30 = vector.load %arg4[%c3, %c0_16, %c0_17] : memref<9x4x8xf32, #tpu.memory_space<vmem>>, vector<1x4x8xf32>
    %31 = vector.shape_cast %30 : vector<1x4x8xf32> to vector<4x8xf32>
    %cst_18 = arith.constant dense<0.000000e+00> : vector<128x8xf32>
    %32 = tpu.matmul %29, %31, %cst_18 {dimension_numbers = #tpu.dot_dimension_numbers<[1], [0], [0], [1], [0, 0, 1, 1], [], []>} : vector<128x4xf32>, vector<4x8xf32>, vector<128x8xf32> -> vector<128x8xf32>
    %33 = arith.addf %24, %32 : vector<128x8xf32>
    %c25_i32 = arith.constant 25 : i32
    %34 = arith.addi %0, %c25_i32 : i32
    %c0_19 = arith.constant 0 : index
    %35 = arith.index_cast %34 : i32 to index
    %c0_20 = arith.constant 0 : index
    %36 = vector.load %arg3[%c0_19, %35, %c0_20] : memref<1x440x4xf32, #tpu.memory_space<vmem>>, vector<1x128x4xf32>
    %37 = vector.shape_cast %36 : vector<1x128x4xf32> to vector<128x4xf32>
    %c4 = arith.constant 4 : index
    %c0_21 = arith.constant 0 : index
    %c0_22 = arith.constant 0 : index
    %38 = vector.load %arg4[%c4, %c0_21, %c0_22] : memref<9x4x8xf32, #tpu.memory_space<vmem>>, vector<1x4x8xf32>
    %39 = vector.shape_cast %38 : vector<1x4x8xf32> to vector<4x8xf32>
    %cst_23 = arith.constant dense<0.000000e+00> : vector<128x8xf32>
    %40 = tpu.matmul %37, %39, %cst_23 {dimension_numbers = #tpu.dot_dimension_numbers<[1], [0], [0], [1], [0, 0, 1, 1], [], []>} : vector<128x4xf32>, vector<4x8xf32>, vector<128x8xf32> -> vector<128x8xf32>
    %41 = arith.addf %33, %40 : vector<128x8xf32>
    %c26_i32 = arith.constant 26 : i32
    %42 = arith.addi %0, %c26_i32 : i32
    %c0_24 = arith.constant 0 : index
    %43 = arith.index_cast %42 : i32 to index
    %c0_25 = arith.constant 0 : index
    %44 = vector.load %arg3[%c0_24, %43, %c0_25] : memref<1x440x4xf32, #tpu.memory_space<vmem>>, vector<1x128x4xf32>
    %45 = vector.shape_cast %44 : vector<1x128x4xf32> to vector<128x4xf32>
    %c5 = arith.constant 5 : index
    %c0_26 = arith.constant 0 : index
    %c0_27 = arith.constant 0 : index
    %46 = vector.load %arg4[%c5, %c0_26, %c0_27] : memref<9x4x8xf32, #tpu.memory_space<vmem>>, vector<1x4x8xf32>
    %47 = vector.shape_cast %46 : vector<1x4x8xf32> to vector<4x8xf32>
    %cst_28 = arith.constant dense<0.000000e+00> : vector<128x8xf32>
    %48 = tpu.matmul %45, %47, %cst_28 {dimension_numbers = #tpu.dot_dimension_numbers<[1], [0], [0], [1], [0, 0, 1, 1], [], []>} : vector<128x4xf32>, vector<4x8xf32>, vector<128x8xf32> -> vector<128x8xf32>
    %49 = arith.addf %41, %48 : vector<128x8xf32>
    %c48_i32 = arith.constant 48 : i32
    %50 = arith.addi %0, %c48_i32 : i32
    %51 = tpu.assume_multiple %50, 8 : i32
    %c0_29 = arith.constant 0 : index
    %52 = arith.index_cast %51 : i32 to index
    %c0_30 = arith.constant 0 : index
    %53 = vector.load %arg3[%c0_29, %52, %c0_30] : memref<1x440x4xf32, #tpu.memory_space<vmem>>, vector<1x128x4xf32>
    %54 = vector.shape_cast %53 : vector<1x128x4xf32> to vector<128x4xf32>
    %c6 = arith.constant 6 : index
    %c0_31 = arith.constant 0 : index
    %c0_32 = arith.constant 0 : index
    %55 = vector.load %arg4[%c6, %c0_31, %c0_32] : memref<9x4x8xf32, #tpu.memory_space<vmem>>, vector<1x4x8xf32>
    %56 = vector.shape_cast %55 : vector<1x4x8xf32> to vector<4x8xf32>
    %cst_33 = arith.constant dense<0.000000e+00> : vector<128x8xf32>
    %57 = tpu.matmul %54, %56, %cst_33 {dimension_numbers = #tpu.dot_dimension_numbers<[1], [0], [0], [1], [0, 0, 1, 1], [], []>} : vector<128x4xf32>, vector<4x8xf32>, vector<128x8xf32> -> vector<128x8xf32>
    %58 = arith.addf %49, %57 : vector<128x8xf32>
    %c49_i32 = arith.constant 49 : i32
    %59 = arith.addi %0, %c49_i32 : i32
    %c0_34 = arith.constant 0 : index
    %60 = arith.index_cast %59 : i32 to index
    %c0_35 = arith.constant 0 : index
    %61 = vector.load %arg3[%c0_34, %60, %c0_35] : memref<1x440x4xf32, #tpu.memory_space<vmem>>, vector<1x128x4xf32>
    %62 = vector.shape_cast %61 : vector<1x128x4xf32> to vector<128x4xf32>
    %c7 = arith.constant 7 : index
    %c0_36 = arith.constant 0 : index
    %c0_37 = arith.constant 0 : index
    %63 = vector.load %arg4[%c7, %c0_36, %c0_37] : memref<9x4x8xf32, #tpu.memory_space<vmem>>, vector<1x4x8xf32>
    %64 = vector.shape_cast %63 : vector<1x4x8xf32> to vector<4x8xf32>
    %cst_38 = arith.constant dense<0.000000e+00> : vector<128x8xf32>
    %65 = tpu.matmul %62, %64, %cst_38 {dimension_numbers = #tpu.dot_dimension_numbers<[1], [0], [0], [1], [0, 0, 1, 1], [], []>} : vector<128x4xf32>, vector<4x8xf32>, vector<128x8xf32> -> vector<128x8xf32>
    %66 = arith.addf %58, %65 : vector<128x8xf32>
    %c50_i32 = arith.constant 50 : i32
    %67 = arith.addi %0, %c50_i32 : i32
    %c0_39 = arith.constant 0 : index
    %68 = arith.index_cast %67 : i32 to index
    %c0_40 = arith.constant 0 : index
    %69 = vector.load %arg3[%c0_39, %68, %c0_40] : memref<1x440x4xf32, #tpu.memory_space<vmem>>, vector<1x128x4xf32>
    %70 = vector.shape_cast %69 : vector<1x128x4xf32> to vector<128x4xf32>
    %c8 = arith.constant 8 : index
    %c0_41 = arith.constant 0 : index
    %c0_42 = arith.constant 0 : index
    %71 = vector.load %arg4[%c8, %c0_41, %c0_42] : memref<9x4x8xf32, #tpu.memory_space<vmem>>, vector<1x4x8xf32>
    %72 = vector.shape_cast %71 : vector<1x4x8xf32> to vector<4x8xf32>
    %cst_43 = arith.constant dense<0.000000e+00> : vector<128x8xf32>
    %73 = tpu.matmul %70, %72, %cst_43 {dimension_numbers = #tpu.dot_dimension_numbers<[1], [0], [0], [1], [0, 0, 1, 1], [], []>} : vector<128x4xf32>, vector<4x8xf32>, vector<128x8xf32> -> vector<128x8xf32>
    %74 = arith.addf %66, %73 : vector<128x8xf32>
    %c0_44 = arith.constant 0 : index
    %c0_45 = arith.constant 0 : index
    %75 = vector.load %arg5[%c0_44, %c0_45] : memref<1x8xf32, #tpu.memory_space<vmem>>, vector<1x8xf32>
    %76 = vector.broadcast %75 : vector<1x8xf32> to vector<128x8xf32>
    %77 = arith.addf %74, %76 : vector<128x8xf32>
    %cst_46 = arith.constant 5.000000e-01 : f32
    %78 = vector.broadcast %cst_46 : f32 to vector<128x8xf32>
    %79 = arith.mulf %78, %77 : vector<128x8xf32>
    %cst_47 = arith.constant 5.000000e-01 : f32
    %80 = vector.broadcast %cst_47 : f32 to vector<128x8xf32>
    %81 = arith.mulf %80, %77 : vector<128x8xf32>
    %82 = math.tanh %81 : vector<128x8xf32>
    %cst_48 = arith.constant 1.000000e+00 : f32
    %83 = vector.broadcast %cst_48 : f32 to vector<128x8xf32>
    %84 = arith.addf %83, %82 : vector<128x8xf32>
    %85 = arith.mulf %79, %84 : vector<128x8xf32>
    %c0_49 = arith.constant 0 : index
    %c0_50 = arith.constant 0 : index
    %c0_51 = arith.constant 0 : index
    %86 = vector.load %arg6[%c0_49, %c0_50, %c0_51] : memref<1x128x8xf32, #tpu.memory_space<vmem>>, vector<1x128x8xf32>
    %87 = vector.shape_cast %86 : vector<1x128x8xf32> to vector<128x8xf32>
    %88 = vector.shape_cast %85 : vector<128x8xf32> to vector<1x128x8xf32>
    tpu.vector_store %arg6[%c0_49, %c0_50, %c0_51], %88 {strides = array<i32>} : memref<1x128x8xf32, #tpu.memory_space<vmem>>, vector<1x128x8xf32>,
    return
  }
  func.func @transform_0(%arg0: i32, %arg1: i32, %arg2: i32) -> (i32, i32, i32) {
    %c0_i32 = arith.constant 0 : i32
    %c0_i32_0 = arith.constant 0 : i32
    %c0_i32_1 = arith.constant 0 : i32
    return %arg0, %c0_i32, %c0_i32_0 : i32, i32, i32
  }
  func.func @transform_1(%arg0: i32, %arg1: i32, %arg2: i32) -> (i32, i32, i32) {
    %c0_i32 = arith.constant 0 : i32
    %c0_i32_0 = arith.constant 0 : i32
    %c0_i32_1 = arith.constant 0 : i32
    return %c0_i32, %c0_i32_0, %arg1 : i32, i32, i32
  }
  func.func @transform_2(%arg0: i32, %arg1: i32, %arg2: i32) -> (i32, i32) {
    %c0_i32 = arith.constant 0 : i32
    %c0_i32_0 = arith.constant 0 : i32
    return %c0_i32, %arg1 : i32, i32
  }
  func.func @transform_3(%arg0: i32, %arg1: i32, %arg2: i32) -> (i32, i32, i32) {
    %c0_i32 = arith.constant 0 : i32
    return %arg0, %arg2, %arg1 : i32, i32, i32
  }
}

</mosaic_0001>

<llo_original>
// kernel: tpu_custom_call.1
$region0: #{tpu_custom_call.1}
  #allocation0 [shape = 'u32[]', space=smem, size = 0x4, offset = 0x4, fixed_abs, tag = 'smem constant byte address 0x4 - core index']
  #allocation1 [shape = 'u32[144,128]{1,0:T(1,128)}', space=vmem, size = 0x12000, scoped, tag = 'internal scratch']
  %s0 = inlined_call_operand.vmem [shape: f32[2,440,4], index: 0, kind: input, shape index: {}]
  %s1 = inlined_call_operand.vmem [shape: f32[9,4,8], index: 1, kind: input, shape index: {}]
  %s2 = inlined_call_operand.vmem [shape: f32[1,8], index: 2, kind: input, shape index: {}]
  %s3 = inlined_call_operand.vmem [shape: f32[2,384,8], index: 3, kind: output, shape index: {}]
  %s4 = sld [smem:[#allocation0]]
  $region45: #{tpu_custom_call.1} parent=0
    _
  %s6 = ssub.s32 1, %s4
  %s7 = scalar_select 0, %s6, %s4
  loop: start=0, step=1, limit=8
  $region2: #{tpu_custom_call.1} parent=0 // loop_pre_header
    _
  $region3: #{tpu_custom_call.1} parent=0 // loop_header
    %s9 = sphi 0, %s13
    %p10 = scmp.ge.s32.totalorder %s9, 8
    %s16 = sphi 0, %s35
    %s17 = sphi 0, %s31
    %s18 = sphi 0, %s27
    %s19 = sphi 0, %s16
    %s20 = sphi 0, %s17
    %s21 = sphi 0, %s18
    %s22 = sphi 0, %s19
    %s23 = sphi 0, %s20
    %s24 = sphi 0, %s21
    %s38 = sphi 0, %s40
    %s41 = sphi 0, %s38
    %s42 = sphi 0, %s41
    %s58 = sphi 0, %s42
    %s64 = sphi 0, %s66
    %s67 = sphi 0, %s64
    %s68 = sphi 0, %s67
    %s84 = sphi 0, %s68
    %s90 = sphi 0, %s92
    %s93 = sphi 0, %s90
    %s94 = sphi 0, %s93
    %s110 = sphi 0, %s94
    %s120 = sphi 0, %s122
    %s123 = sphi 0, %s120
    %s124 = sphi 0, %s123
    %s140 = sphi 0, %s124
  $region4: #{tpu_custom_call.1} parent=0 // loop_header_branch
    %12 = sbr.rel (%p10) target = $region8
  $region5: #{tpu_custom_call.1} parent=0 // loop_body
    %s14 = ssub.s32 %s9, 1
    %s15 = ssub.s32 %s9, 2
    %s25 = sadd.s32 1, %s18
    %p26 = scmp.ge.s32.totalorder %s25, 3
    %s27 = scalar_select %p26, 0, %s25
    %s28 = sadd.s32 1, %s17
    %s29 = scalar_select %p26, %s28, %s17
    %p30 = scmp.ge.s32.totalorder %s29, 1
    %s31 = scalar_select %p30, 0, %s29
    %s32 = sadd.s32 1, %s16
    %s33 = scalar_select %p30, %s32, %s16
    %p34 = scmp.ge.s32.totalorder %s33, 2
    %s35 = scalar_select %p34, 0, %s33
    %s36 = ssub.s32 %s16, %s35
    %p37 = scmp.eq.s32.totalorder %s36, 0
    %s39 = sadd.s32 %s38, 1
    %s40 = scalar_select %p37, %s38, %s39
    %p43 = pneg %p37
    %p44 = scmp.eq.s32.totalorder %s9, 5
    %p45 = por %p43, %p44
    %p46 = scmp.ne.s32.totalorder %s38, %s41
    %p47 = scmp.eq.s32.totalorder %s9, 0
    %p48 = por %p46, %p47
    %p49 = scmp.ne.s32.totalorder %s38, %s41
    %p50 = scmp.eq.s32.totalorder %s14, 5
    %p51 = por %p49, %p50
    %p52 = scmp.ne.s32.totalorder %s41, %s42
    %p53 = scmp.eq.s32.totalorder %s14, 0
    %p54 = por %p52, %p53
    %p55 = scmp.ne.s32.totalorder %s41, %s42
    %p56 = scmp.eq.s32.totalorder %s15, 5
    %p57 = por %p55, %p56
    %p59 = scmp.ne.s32.totalorder %s42, %s58
    %p60 = scmp.eq.s32.totalorder %s15, 0
    %p61 = por %p59, %p60
    %s62 = ssub.s32 %s17, %s31
    %p63 = scmp.eq.s32.totalorder %s62, 0
    %s65 = sadd.s32 %s64, 1
    %s66 = scalar_select %p63, %s64, %s65
    %p69 = pneg %p63
    %p70 = scmp.eq.s32.totalorder %s9, 5
    %p71 = por %p69, %p70
    %p72 = scmp.ne.s32.totalorder %s64, %s67
    %p73 = scmp.eq.s32.totalorder %s9, 0
    %p74 = por %p72, %p73
    %p75 = scmp.ne.s32.totalorder %s64, %s67
    %p76 = scmp.eq.s32.totalorder %s14, 5
    %p77 = por %p75, %p76
    %p78 = scmp.ne.s32.totalorder %s67, %s68
    %p79 = scmp.eq.s32.totalorder %s14, 0
    %p80 = por %p78, %p79
    %p81 = scmp.ne.s32.totalorder %s67, %s68
    %p82 = scmp.eq.s32.totalorder %s15, 5
    %p83 = por %p81, %p82
    %p85 = scmp.ne.s32.totalorder %s68, %s84
    %p86 = scmp.eq.s32.totalorder %s15, 0
    %p87 = por %p85, %p86
    %s88 = ssub.s32 %s17, %s31
    %p89 = scmp.eq.s32.totalorder %s88, 0
    %s91 = sadd.s32 %s90, 1
    %s92 = scalar_select %p89, %s90, %s91
    %p95 = pneg %p89
    %p96 = scmp.eq.s32.totalorder %s9, 5
    %p97 = por %p95, %p96
    %p98 = scmp.ne.s32.totalorder %s90, %s93
    %p99 = scmp.eq.s32.totalorder %s9, 0
    %p100 = por %p98, %p99
    %p101 = scmp.ne.s32.totalorder %s90, %s93
    %p102 = scmp.eq.s32.totalorder %s14, 5
    %p103 = por %p101, %p102
    %p104 = scmp.ne.s32.totalorder %s93, %s94
    %p105 = scmp.eq.s32.totalorder %s14, 0
    %p106 = por %p104, %p105
    %p107 = scmp.ne.s32.totalorder %s93, %s94
    %p108 = scmp.eq.s32.totalorder %s15, 5
    %p109 = por %p107, %p108
    %p111 = scmp.ne.s32.totalorder %s94, %s110
    %p112 = scmp.eq.s32.totalorder %s15, 0
    %p113 = por %p111, %p112
    %s114 = ssub.s32 %s16, %s35
    %s115 = ssub.s32 %s18, %s27
    %s116 = sor.u32 %s114, %s115
    %s117 = ssub.s32 %s17, %s31
    %s118 = sor.u32 %s116, %s117
    %p119 = scmp.eq.s32.totalorder %s118, 0
    %s121 = sadd.s32 %s120, 1
    %s122 = scalar_select %p119, %s120, %s121
    %p125 = pneg %p119
    %p126 = scmp.eq.s32.totalorder %s9, 5
    %p127 = por %p125, %p126
    %p128 = scmp.ne.s32.totalorder %s120, %s123
    %p129 = scmp.eq.s32.totalorder %s9, 0
    %p130 = por %p128, %p129
    %p131 = scmp.ne.s32.totalorder %s120, %s123
    %p132 = scmp.eq.s32.totalorder %s14, 5
    %p133 = por %p131, %p132
    %p134 = scmp.ne.s32.totalorder %s123, %s124
    %p135 = scmp.eq.s32.totalorder %s14, 0
    %p136 = por %p134, %p135
    %p137 = scmp.ne.s32.totalorder %s123, %s124
    %p138 = scmp.eq.s32.totalorder %s15, 5
    %p139 = por %p137, %p138
    %p141 = scmp.ne.s32.totalorder %s124, %s140
    %p142 = scmp.eq.s32.totalorder %s15, 0
    %p143 = por %p141, %p142
    %p144 = scmp.le.s32.totalorder 1, %s9
    %p145 = scmp.lt.s32.totalorder %s9, 7
    %p146 = pnand %p144, %p145
    %p147 = pneg %p146
    // Predicated region
    $region9: #{tpu_custom_call.1} parent=5 // pred_check
      _
    $region10: #{tpu_custom_call.1} parent=5 // pred_check_branch
      %149 = sbr.rel (%p146) target = $region12
    $region11: #{tpu_custom_call.1} parent=5 // pred_region
      %s150 = ssub.s32 %s9, 1
      // Predicated region
      $region13: #{tpu_custom_call.1} parent=11 // pred_check
        %p151 = pneg %p80
      $region14: #{tpu_custom_call.1} parent=11 // pred_check_branch
        %153 = sbr.rel (%p151) target = $region16
      $region15: #{tpu_custom_call.1} parent=11 // pred_region
        %p154 = scmp.lt.s32.totalorder %s20, 0
        %s155 = scalar_select %p154, %s20, 0
        %s156 = smul.addr %s155, 4
        %s157 = scalar_lea.vmem %s1, %s156
      $region16: #{tpu_custom_call.1} parent=11 // pred_fallthru
        _
      // Predicated region
      $region17: #{tpu_custom_call.1} parent=11 // pred_check
        %p158 = pneg %p106
      $region18: #{tpu_custom_call.1} parent=11 // pred_check_branch
        %160 = sbr.rel (%p158) target = $region20
      $region19: #{tpu_custom_call.1} parent=11 // pred_region
        %p161 = scmp.lt.s32.totalorder %s20, 0
        %s162 = scalar_select %p161, %s20, 0
        %s163 = scalar_lea.vmem %s2, %s162
      $region20: #{tpu_custom_call.1} parent=11 // pred_fallthru
        _
    $region12: #{tpu_custom_call.1} parent=5 // pred_fallthru
      _
    %p164 = scmp.lt.s32.totalorder %s9, 6
    // Predicated region
    $region21: #{tpu_custom_call.1} parent=5 // pred_check
      %p165 = pneg %p164
    $region22: #{tpu_custom_call.1} parent=5 // pred_check_branch
      %167 = sbr.rel (%p165) target = $region24
    $region23: #{tpu_custom_call.1} parent=5 // pred_region
      // Predicated region
      $region25: #{tpu_custom_call.1} parent=23 // pred_check
        %p168 = pneg %p48
      $region26: #{tpu_custom_call.1} parent=23 // pred_check_branch
        %170 = sbr.rel (%p168) target = $region28
      $region27: #{tpu_custom_call.1} parent=23 // pred_region
        %p171 = scmp.lt.s32.totalorder %s16, 1
        %s172 = scalar_select %p171, %s16, 1
        %s173 = smul.addr %s172, 55
        %s174 = smul.addr %s173, 8
        %s175 = scalar_lea.vmem %s0, %s174
      $region28: #{tpu_custom_call.1} parent=23 // pred_fallthru
        _
    $region24: #{tpu_custom_call.1} parent=5 // pred_fallthru
      _
    %p176 = scmp.le.s32.totalorder 1, %s9
    %p177 = scmp.lt.s32.totalorder %s9, 7
    %p178 = pnand %p176, %p177
    %p179 = pneg %p178
    // Predicated region
    $region29: #{tpu_custom_call.1} parent=5 // pred_check
      _
    $region30: #{tpu_custom_call.1} parent=5 // pred_check_branch
      %181 = sbr.rel (%p178) target = $region32
    $region31: #{tpu_custom_call.1} parent=5 // pred_region
      %s182 = ssub.s32 %s9, 1
      %p183 = scmp.lt.s32.totalorder %s19, 1
      %s184 = scalar_select %p183, %s19, 1
      %s185 = smul.addr %s184, 55
      %s186 = smul.addr %s185, 8
      %s187 = scalar_lea.vmem %s0, %s186
      %p188 = pneg %p54
      %p189 = pneg %p51
      %p190 = scmp.lt.s32.totalorder %s20, 0
      %s191 = scalar_select %p190, %s20, 0
      %s192 = smul.addr %s191, 4
      %s193 = scalar_lea.vmem %s1, %s192
      %p194 = pneg %p80
      %p195 = pneg %p77
      %p196 = scmp.lt.s32.totalorder %s20, 0
      %s197 = scalar_select %p196, %s20, 0
      %s198 = scalar_lea.vmem %s2, %s197
      %p199 = pneg %p106
      %p200 = pneg %p103
      %p201 = pneg %p136
      %p202 = pneg %p133
      %s203 = smul.u32 16, %s21
      %p204 = scmp.lt.s32.totalorder %s19, 1
      %s205 = scalar_select %p204, %s19, 1
      %p206 = scmp.lt.s32.totalorder %s203, 47
      %s207 = scalar_select %p206, %s203, 47
      %p208 = scmp.lt.s32.totalorder %s20, 0
      %s209 = scalar_select %p208, %s20, 0
      %s210 = sadd.s32 %s209, %s207
      %s211 = smul.addr %s205, 48
      %s212 = sadd.s32 %s210, %s211
      %s213 = smul.addr %s212, 8
      %s214 = scalar_lea.vmem %s3, %s213
      %p215 = scmp.lt.s32.totalorder %s19, 1
      %s216 = scalar_select %p215, %s19, 1
      %s217 = smul.addr %s216, 55
      %s218 = smul.addr %s217, 8
      %s219 = scalar_lea.vmem %s0, %s218
      %p220 = scmp.lt.s32.totalorder %s20, 0
      %s221 = scalar_select %p220, %s20, 0
      %s222 = smul.addr %s221, 4
      %s223 = scalar_lea.vmem %s1, %s222
      %p224 = scmp.lt.s32.totalorder %s20, 0
      %s225 = scalar_select %p224, %s20, 0
      %s226 = scalar_lea.vmem %s2, %s225
      %s227 = smul.u32 16, %s21
      %p228 = scmp.lt.s32.totalorder %s19, 1
      %s229 = scalar_select %p228, %s19, 1
      %p230 = scmp.lt.s32.totalorder %s227, 47
      %s231 = scalar_select %p230, %s227, 47
      %p232 = scmp.lt.s32.totalorder %s20, 0
      %s233 = scalar_select %p232, %s20, 0
      %s234 = sadd.s32 %s233, %s231
      %s235 = smul.addr %s229, 48
      %s236 = sadd.s32 %s234, %s235
      %s237 = smul.addr %s236, 8
      %s238 = scalar_lea.vmem %s3, %s237
      %s239 = smul.u32 16, %s21
      %s240 = smul.u32 %s21, 128
      %s241 = scalar_lea.vmem %s219, %s240
      %v242 = vld [vmem:[%s241] sm:$0xff]
      %v243 = vld [vmem:[%s241 + $0x8] sm:$0xff]
      %v244 = vld [vmem:[%s241 + $0x10] sm:$0xff]
      %v245 = vld [vmem:[%s241 + $0x18] sm:$0xff]
      %v246 = vld [vmem:[%s241 + $0x20] sm:$0xff]
      %v247 = vld [vmem:[%s241 + $0x28] sm:$0xff]
      %v248 = vld [vmem:[%s241 + $0x30] sm:$0xff]
      %v249 = vld [vmem:[%s241 + $0x38] sm:$0xff]
      %v250 = vld [vmem:[%s241 + $0x40] sm:$0xff]
      %v251 = vld [vmem:[%s241 + $0x48] sm:$0xff]
      %v252 = vld [vmem:[%s241 + $0x50] sm:$0xff]
      %v253 = vld [vmem:[%s241 + $0x58] sm:$0xff]
      %v254 = vld [vmem:[%s241 + $0x60] sm:$0xff]
      %v255 = vld [vmem:[%s241 + $0x68] sm:$0xff]
      %v256 = vld [vmem:[%s241 + $0x70] sm:$0xff]
      %v257 = vld [vmem:[%s241 + $0x78] sm:$0xff]
      %v258 = vld [vmem:[%s223] sm:$0xf]
      %s259 = sadd.s32 %s240, 1
      %s260 = scalar_lea.vmem %s219, %s259
      %v261 = vld [vmem:[%s260] sm:$0xff]
      %v262 = vld [vmem:[%s260 + $0x8] sm:$0xff]
      %v263 = vld [vmem:[%s260 + $0x10] sm:$0xff]
      %v264 = vld [vmem:[%s260 + $0x18] sm:$0xff]
      %v265 = vld [vmem:[%s260 + $0x20] sm:$0xff]
      %v266 = vld [vmem:[%s260 + $0x28] sm:$0xff]
      %v267 = vld [vmem:[%s260 + $0x30] sm:$0xff]
      %v268 = vld [vmem:[%s260 + $0x38] sm:$0xff]
      %v269 = vld [vmem:[%s260 + $0x40] sm:$0xff]
      %v270 = vld [vmem:[%s260 + $0x48] sm:$0xff]
      %v271 = vld [vmem:[%s260 + $0x50] sm:$0xff]
      %v272 = vld [vmem:[%s260 + $0x58] sm:$0xff]
      %v273 = vld [vmem:[%s260 + $0x60] sm:$0xff]
      %v274 = vld [vmem:[%s260 + $0x68] sm:$0xff]
      %v275 = vld [vmem:[%s260 + $0x70] sm:$0xff]
      %v276 = vld [vmem:[%s260 + $0x78] sm:$0xff]
      %s277 = scalar_lea.vmem %s223, 4
      %v278 = vld [vmem:[%s277] sm:$0xf]
      %vm279 = vcmask 31744
      %v281 = vsel %vm279, %v261, 0
      %v284 = vsel %vm279, %v262, 0
      %v287 = vsel %vm279, %v263, 0
      %v290 = vsel %vm279, %v264, 0
      %v293 = vsel %vm279, %v265, 0
      %v296 = vsel %vm279, %v266, 0
      %v299 = vsel %vm279, %v267, 0
      %v302 = vsel %vm279, %v268, 0
      %v305 = vsel %vm279, %v269, 0
      %v308 = vsel %vm279, %v270, 0
      %v311 = vsel %vm279, %v271, 0
      %v314 = vsel %vm279, %v272, 0
      %v317 = vsel %vm279, %v273, 0
      %v320 = vsel %vm279, %v274, 0
      %v323 = vsel %vm279, %v275, 0
      %v326 = vsel %vm279, %v276, 0
      %vm328 = vcmask 1043456
      %v330 = vsel %vm328, %v278, 0
      %332 = vmatprep.subr.mxu0 0.0
      %333 = vmatpush1.msra.mxu0 %v330
      %334 = vmatprep.subr.mxu0 0.0
      %335 = vmatpush1.msra.mxu0 0.0
      %336 = vmatprep.subr.mxu0 0.0
      %337 = vmatpush1.msra.mxu0 0.0
      %338 = vmatprep.subr.mxu0 0.0
      %339 = vmatpush1.msra.mxu0 0.0
      %340 = vmatprep.subr.mxu0 0.0
      %341 = vmatpush1.msra.mxu0 0.0
      %342 = vmatprep.subr.mxu0 0.0
      %343 = vmatpush1.msra.mxu0 0.0
      %344 = vmatprep.subr.mxu0 0.0
      %345 = vmatpush1.msra.mxu0 0.0
      %346 = vmatprep.subr.mxu0 0.0
      %347 = vmatpush1.msra.mxu0 0.0
      %348 = vmatprep.subr.mxu0 0.0
      %349 = vmatpush1.msra.mxu0 0.0
      %350 = vmatprep.subr.mxu0 0.0
      %351 = vmatpush1.msra.mxu0 0.0
      %352 = vmatprep.subr.mxu0 0.0
      %353 = vmatpush1.msra.mxu0 0.0
      %354 = vmatprep.subr.mxu0 0.0
      %355 = vmatpush1.msra.mxu0 0.0
      %356 = vmatprep.subr.mxu0 0.0
      %357 = vmatpush1.msra.mxu0 0.0
      %358 = vmatprep.subr.mxu0 0.0
      %359 = vmatpush1.msra.mxu0 0.0
      %360 = vmatprep.subr.mxu0 0.0
      %361 = vmatpush1.msra.mxu0 0.0
      %362 = vmatprep.subr.mxu0 0.0
      %363 = vmatpush1.msra.mxu0 0.0
      %364 = vmatprep.subr.mxu0 0.0
      %365 = vmatpush1.msra.mxu0 0.0
      %366 = vmatprep.subr.mxu0 0.0
      %367 = vmatpush1.msra.mxu0 0.0
      %368 = vmatprep.subr.mxu0 0.0
      %369 = vmatpush1.msra.mxu0 0.0
      %370 = vmatprep.subr.mxu0 0.0
      %371 = vmatpush1.msra.mxu0 0.0
      %372 = vmatprep.subr.mxu0 0.0
      %373 = vmatpush1.msra.mxu0 0.0
      %374 = vmatprep.subr.mxu0 0.0
      %375 = vmatpush1.msra.mxu0 0.0
      %376 = vmatprep.subr.mxu0 0.0
      %377 = vmatpush1.msra.mxu0 0.0
      %378 = vmatprep.subr.mxu0 0.0
      %379 = vmatpush1.msra.mxu0 0.0
      %380 = vmatprep.subr.mxu0 0.0
      %381 = vmatpush1.msra.mxu0 0.0
      %382 = vmatprep.subr.mxu0 0.0
      %383 = vmatpush1.msra.mxu0 0.0
      %384 = vmatprep.subr.mxu0 0.0
      %385 = vmatpush1.msra.mxu0 0.0
      %386 = vmatprep.subr.mxu0 0.0
      %387 = vmatpush1.msra.mxu0 0.0
      %388 = vmatprep.subr.mxu0 0.0
      %389 = vmatpush1.msra.mxu0 0.0
      %390 = vmatprep.subr.mxu0 0.0
      %391 = vmatpush1.msra.mxu0 0.0
      %392 = vmatprep.subr.mxu0 0.0
      %393 = vmatpush1.msra.mxu0 0.0
      %394 = vmatprep.subr.mxu0 0.0
      %395 = vmatpush1.msra.mxu0 0.0
      %396 = vmatprep.mubr.f32.mxu0 0.0
      %397 = vmatmul.mubr.f32.gmra.mrb[0].mxu0 %v281
      %v398 = vpop.f32.mrb[0].mxu0
      %v399 = vadd.f32 0.0, %v398
      %v400 = vpop.f32.mrb[0].mxu0
      %401 = vmatprep.mubr.f32.mxu0 0.0
      %402 = vmatmul.mubr.f32.gmra.mrb[0].mxu0 %v284
      %v403 = vpop.f32.mrb[0].mxu0
      %v404 = vadd.f32 0.0, %v403
      %v405 = vpop.f32.mrb[0].mxu0
      %406 = vmatprep.mubr.f32.mxu0 0.0
      %407 = vmatmul.mubr.f32.gmra.mrb[0].mxu0 %v287
      %v408 = vpop.f32.mrb[0].mxu0
      %v409 = vadd.f32 0.0, %v408
      %v410 = vpop.f32.mrb[0].mxu0
      %411 = vmatprep.mubr.f32.mxu0 0.0
      %412 = vmatmul.mubr.f32.gmra.mrb[0].mxu0 %v290
      %v413 = vpop.f32.mrb[0].mxu0
      %v414 = vadd.f32 0.0, %v413
      %v415 = vpop.f32.mrb[0].mxu0
      %416 = vmatprep.mubr.f32.mxu0 0.0
      %417 = vmatmul.mubr.f32.gmra.mrb[0].mxu0 %v293
      %v418 = vpop.f32.mrb[0].mxu0
      %v419 = vadd.f32 0.0, %v418
      %v420 = vpop.f32.mrb[0].mxu0
      %421 = vmatprep.mubr.f32.mxu0 0.0
      %422 = vmatmul.mubr.f32.gmra.mrb[0].mxu0 %v296
      %v423 = vpop.f32.mrb[0].mxu0
      %v424 = vadd.f32 0.0, %v423
      %v425 = vpop.f32.mrb[0].mxu0
      %426 = vmatprep.mubr.f32.mxu0 0.0
      %427 = vmatmul.mubr.f32.gmra.mrb[0].mxu0 %v299
      %v428 = vpop.f32.mrb[0].mxu0
      %v429 = vadd.f32 0.0, %v428
      %v430 = vpop.f32.mrb[0].mxu0
      %431 = vmatprep.mubr.f32.mxu0 0.0
      %432 = vmatmul.mubr.f32.gmra.mrb[0].mxu0 %v302
      %v433 = vpop.f32.mrb[0].mxu0
      %v434 = vadd.f32 0.0, %v433
      %v435 = vpop.f32.mrb[0].mxu0
      %436 = vmatprep.mubr.f32.mxu0 0.0
      %437 = vmatmul.mubr.f32.gmra.mrb[0].mxu0 %v305
      %v438 = vpop.f32.mrb[0].mxu0
      %v439 = vadd.f32 0.0, %v438
      %v440 = vpop.f32.mrb[0].mxu0
      %441 = vmatprep.mubr.f32.mxu0 0.0
      %442 = vmatmul.mubr.f32.gmra.mrb[0].mxu0 %v308
      %v443 = vpop.f32.mrb[0].mxu0
      %v444 = vadd.f32 0.0, %v443
      %v445 = vpop.f32.mrb[0].mxu0
      %446 = vmatprep.mubr.f32.mxu0 0.0
      %447 = vmatmul.mubr.f32.gmra.mrb[0].mxu0 %v311
      %v448 = vpop.f32.mrb[0].mxu0
      %v449 = vadd.f32 0.0, %v448
      %v450 = vpop.f32.mrb[0].mxu0
      %451 = vmatprep.mubr.f32.mxu0 0.0
      %452 = vmatmul.mubr.f32.gmra.mrb[0].mxu0 %v314
      %v453 = vpop.f32.mrb[0].mxu0
      %v454 = vadd.f32 0.0, %v453
      %v455 = vpop.f32.mrb[0].mxu0
      %456 = vmatprep.mubr.f32.mxu0 0.0
      %457 = vmatmul.mubr.f32.gmra.mrb[0].mxu0 %v317
      %v458 = vpop.f32.mrb[0].mxu0
      %v459 = vadd.f32 0.0, %v458
      %v460 = vpop.f32.mrb[0].mxu0
      %461 = vmatprep.mubr.f32.mxu0 0.0
      %462 = vmatmul.mubr.f32.gmra.mrb[0].mxu0 %v320
      %v463 = vpop.f32.mrb[0].mxu0
      %v464 = vadd.f32 0.0, %v463
      %v465 = vpop.f32.mrb[0].mxu0
      %466 = vmatprep.mubr.f32.mxu0 0.0
      %467 = vmatmul.mubr.f32.gmra.mrb[0].mxu0 %v323
      %v468 = vpop.f32.mrb[0].mxu0
      %v469 = vadd.f32 0.0, %v468
      %v470 = vpop.f32.mrb[0].mxu0
      %471 = vmatprep.mubr.f32.mxu0 0.0
      %472 = vmatmul.mubr.f32.gmra.mrb[0].mxu0 %v326
      %v473 = vpop.f32.mrb[0].mxu0
      %v474 = vadd.f32 0.0, %v473
      %v475 = vpop.f32.mrb[0].mxu0
      %476 = vdwg.mxu0
      %v478 = vsel %vm279, %v242, 0
      %v481 = vsel %vm279, %v243, 0
      %v484 = vsel %vm279, %v244, 0
      %v487 = vsel %vm279, %v245, 0
      %v490 = vsel %vm279, %v246, 0
      %v493 = vsel %vm279, %v247, 0
      %v496 = vsel %vm279, %v248, 0
      %v499 = vsel %vm279, %v249, 0
      %v502 = vsel %vm279, %v250, 0
      %v505 = vsel %vm279, %v251, 0
      %v508 = vsel %vm279, %v252, 0
      %v511 = vsel %vm279, %v253, 0
      %v514 = vsel %vm279, %v254, 0
      %v517 = vsel %vm279, %v255, 0
      %v520 = vsel %vm279, %v256, 0
      %v523 = vsel %vm279, %v257, 0
      %v526 = vsel %vm328, %v258, 0
      %528 = vmatprep.subr.mxu0 0.0
      %529 = vmatpush1.msra.mxu0 %v526
      %530 = vmatprep.subr.mxu0 0.0
      %531 = vmatpush1.msra.mxu0 0.0
      %532 = vmatprep.subr.mxu0 0.0
      %533 = vmatpush1.msra.mxu0 0.0
      %534 = vmatprep.subr.mxu0 0.0
      %535 = vmatpush1.msra.mxu0 0.0
      %536 = vmatprep.subr.mxu0 0.0
      %537 = vmatpush1.msra.mxu0 0.0
      %538 = vmatprep.subr.mxu0 0.0
      %539 = vmatpush1.msra.mxu0 0.0
      %540 = vmatprep.subr.mxu0 0.0
      %541 = vmatpush1.msra.mxu0 0.0
      %542 = vmatprep.subr.mxu0 0.0
      %543 = vmatpush1.msra.mxu0 0.0
      %544 = vmatprep.subr.mxu0 0.0
      %545 = vmatpush1.msra.mxu0 0.0
      %546 = vmatprep.subr.mxu0 0.0
      %547 = vmatpush1.msra.mxu0 0.0
      %548 = vmatprep.subr.mxu0 0.0
      %549 = vmatpush1.msra.mxu0 0.0
      %550 = vmatprep.subr.mxu0 0.0
      %551 = vmatpush1.msra.mxu0 0.0
      %552 = vmatprep.subr.mxu0 0.0
      %553 = vmatpush1.msra.mxu0 0.0
      %554 = vmatprep.subr.mxu0 0.0
      %555 = vmatpush1.msra.mxu0 0.0
      %556 = vmatprep.subr.mxu0 0.0
      %557 = vmatpush1.msra.mxu0 0.0
      %558 = vmatprep.subr.mxu0 0.0
      %559 = vmatpush1.msra.mxu0 0.0
      %560 = vmatprep.subr.mxu0 0.0
      %561 = vmatpush1.msra.mxu0 0.0
      %562 = vmatprep.subr.mxu0 0.0
      %563 = vmatpush1.msra.mxu0 0.0
      %564 = vmatprep.subr.mxu0 0.0
      %565 = vmatpush1.msra.mxu0 0.0
      %566 = vmatprep.subr.mxu0 0.0
      %567 = vmatpush1.msra.mxu0 0.0
      %568 = vmatprep.subr.mxu0 0.0
      %569 = vmatpush1.msra.mxu0 0.0
      %570 = vmatprep.subr.mxu0 0.0
      %571 = vmatpush1.msra.mxu0 0.0
      %572 = vmatprep.subr.mxu0 0.0
      %573 = vmatpush1.msra.mxu0 0.0
      %574 = vmatprep.subr.mxu0 0.0
      %575 = vmatpush1.msra.mxu0 0.0
      %576 = vmatprep.subr.mxu0 0.0
      %577 = vmatpush1.msra.mxu0 0.0
      %578 = vmatprep.subr.mxu0 0.0
      %579 = vmatpush1.msra.mxu0 0.0
      %580 = vmatprep.subr.mxu0 0.0
      %581 = vmatpush1.msra.mxu0 0.0
      %582 = vmatprep.subr.mxu0 0.0
      %583 = vmatpush1.msra.mxu0 0.0
      %584 = vmatprep.subr.mxu0 0.0
      %585 = vmatpush1.msra.mxu0 0.0
      %586 = vmatprep.subr.mxu0 0.0
      %587 = vmatpush1.msra.mxu0 0.0
      %588 = vmatprep.subr.mxu0 0.0
      %589 = vmatpush1.msra.mxu0 0.0
      %590 = vmatprep.subr.mxu0 0.0
      %591 = vmatpush1.msra.mxu0 0.0
      %592 = vmatprep.mubr.f32.mxu0 0.0
      %593 = vmatmul.mubr.f32.gmra.mrb[0].mxu0 %v478
      %v594 = vpop.f32.mrb[0].mxu0
      %v595 = vadd.f32 %v399, %v594
      %v596 = vpop.f32.mrb[0].mxu0
      %597 = vmatprep.mubr.f32.mxu0 0.0
      %598 = vmatmul.mubr.f32.gmra.mrb[0].mxu0 %v481
      %v599 = vpop.f32.mrb[0].mxu0
      %v600 = vadd.f32 %v404, %v599
      %v601 = vpop.f32.mrb[0].mxu0
      %602 = vmatprep.mubr.f32.mxu0 0.0
      %603 = vmatmul.mubr.f32.gmra.mrb[0].mxu0 %v484
      %v604 = vpop.f32.mrb[0].mxu0
      %v605 = vadd.f32 %v409, %v604
      %v606 = vpop.f32.mrb[0].mxu0
      %607 = vmatprep.mubr.f32.mxu0 0.0
      %608 = vmatmul.mubr.f32.gmra.mrb[0].mxu0 %v487
      %v609 = vpop.f32.mrb[0].mxu0
      %v610 = vadd.f32 %v414, %v609
      %v611 = vpop.f32.mrb[0].mxu0
      %612 = vmatprep.mubr.f32.mxu0 0.0
      %613 = vmatmul.mubr.f32.gmra.mrb[0].mxu0 %v490
      %v614 = vpop.f32.mrb[0].mxu0
      %v615 = vadd.f32 %v419, %v614
      %v616 = vpop.f32.mrb[0].mxu0
      %617 = vmatprep.mubr.f32.mxu0 0.0
      %618 = vmatmul.mubr.f32.gmra.mrb[0].mxu0 %v493
      %v619 = vpop.f32.mrb[0].mxu0
      %v620 = vadd.f32 %v424, %v619
      %v621 = vpop.f32.mrb[0].mxu0
      %622 = vmatprep.mubr.f32.mxu0 0.0
      %623 = vmatmul.mubr.f32.gmra.mrb[0].mxu0 %v496
      %v624 = vpop.f32.mrb[0].mxu0
      %v625 = vadd.f32 %v429, %v624
      %v626 = vpop.f32.mrb[0].mxu0
      %627 = vmatprep.mubr.f32.mxu0 0.0
      %628 = vmatmul.mubr.f32.gmra.mrb[0].mxu0 %v499
      %v629 = vpop.f32.mrb[0].mxu0
      %v630 = vadd.f32 %v434, %v629
      %v631 = vpop.f32.mrb[0].mxu0
      %632 = vmatprep.mubr.f32.mxu0 0.0
      %633 = vmatmul.mubr.f32.gmra.mrb[0].mxu0 %v502
      %v634 = vpop.f32.mrb[0].mxu0
      %v635 = vadd.f32 %v439, %v634
      %v636 = vpop.f32.mrb[0].mxu0
      %637 = vmatprep.mubr.f32.mxu0 0.0
      %638 = vmatmul.mubr.f32.gmra.mrb[0].mxu0 %v505
      %v639 = vpop.f32.mrb[0].mxu0
      %v640 = vadd.f32 %v444, %v639
      %v641 = vpop.f32.mrb[0].mxu0
      %642 = vmatprep.mubr.f32.mxu0 0.0
      %643 = vmatmul.mubr.f32.gmra.mrb[0].mxu0 %v508
      %v644 = vpop.f32.mrb[0].mxu0
      %v645 = vadd.f32 %v449, %v644
      %v646 = vpop.f32.mrb[0].mxu0
      %647 = vmatprep.mubr.f32.mxu0 0.0
      %648 = vmatmul.mubr.f32.gmra.mrb[0].mxu0 %v511
      %v649 = vpop.f32.mrb[0].mxu0
      %v650 = vadd.f32 %v454, %v649
      %v651 = vpop.f32.mrb[0].mxu0
      %652 = vmatprep.mubr.f32.mxu0 0.0
      %653 = vmatmul.mubr.f32.gmra.mrb[0].mxu0 %v514
      %v654 = vpop.f32.mrb[0].mxu0
      %v655 = vadd.f32 %v459, %v654
      %v656 = vpop.f32.mrb[0].mxu0
      %657 = vmatprep.mubr.f32.mxu0 0.0
      %658 = vmatmul.mubr.f32.gmra.mrb[0].mxu0 %v517
      %v659 = vpop.f32.mrb[0].mxu0
      %v660 = vadd.f32 %v464, %v659
      %v661 = vpop.f32.mrb[0].mxu0
      %662 = vmatprep.mubr.f32.mxu0 0.0
      %663 = vmatmul.mubr.f32.gmra.mrb[0].mxu0 %v520
      %v664 = vpop.f32.mrb[0].mxu0
      %v665 = vadd.f32 %v469, %v664
      %v666 = vpop.f32.mrb[0].mxu0
      %667 = vmatprep.mubr.f32.mxu0 0.0
      %668 = vmatmul.mubr.f32.gmra.mrb[0].mxu0 %v523
      %v669 = vpop.f32.mrb[0].mxu0
      %v670 = vadd.f32 %v474, %v669
      %v671 = vpop.f32.mrb[0].mxu0
      %672 = vdwg.mxu0
      %s673 = sadd.s32 %s240, 2
      %s674 = scalar_lea.vmem %s219, %s673
      %v675 = vld [vmem:[%s674] sm:$0xff]
      %v676 = vld [vmem:[%s674 + $0x8] sm:$0xff]
      %v677 = vld [vmem:[%s674 + $0x10] sm:$0xff]
      %v678 = vld [vmem:[%s674 + $0x18] sm:$0xff]
      %v679 = vld [vmem:[%s674 + $0x20] sm:$0xff]
      %v680 = vld [vmem:[%s674 + $0x28] sm:$0xff]
      %v681 = vld [vmem:[%s674 + $0x30] sm:$0xff]
      %v682 = vld [vmem:[%s674 + $0x38] sm:$0xff]
      %v683 = vld [vmem:[%s674 + $0x40] sm:$0xff]
      %v684 = vld [vmem:[%s674 + $0x48] sm:$0xff]
      %v685 = vld [vmem:[%s674 + $0x50] sm:$0xff]
      %v686 = vld [vmem:[%s674 + $0x58] sm:$0xff]
      %v687 = vld [vmem:[%s674 + $0x60] sm:$0xff]
      %v688 = vld [vmem:[%s674 + $0x68] sm:$0xff]
      %v689 = vld [vmem:[%s674 + $0x70] sm:$0xff]
      %v690 = vld [vmem:[%s674 + $0x78] sm:$0xff]
      %s691 = scalar_lea.vmem %s223, 8
      %v692 = vld [vmem:[%s691] sm:$0xf]
      %v694 = vsel %vm279, %v675, 0
      %v697 = vsel %vm279, %v676, 0
      %v700 = vsel %vm279, %v677, 0
      %v703 = vsel %vm279, %v678, 0
      %v706 = vsel %vm279, %v679, 0
      %v709 = vsel %vm279, %v680, 0
      %v712 = vsel %vm279, %v681, 0
      %v715 = vsel %vm279, %v682, 0
      %v718 = vsel %vm279, %v683, 0
      %v721 = vsel %vm279, %v684, 0
      %v724 = vsel %vm279, %v685, 0
      %v727 = vsel %vm279, %v686, 0
      %v730 = vsel %vm279, %v687, 0
      %v733 = vsel %vm279, %v688, 0
      %v736 = vsel %vm279, %v689, 0
      %v739 = vsel %vm279, %v690, 0
      %v742 = vsel %vm328, %v692, 0
      %744 = vmatprep.subr.mxu0 0.0
      %745 = vmatpush1.msra.mxu0 %v742
      %746 = vmatprep.subr.mxu0 0.0
      %747 = vmatpush1.msra.mxu0 0.0
      %748 = vmatprep.subr.mxu0 0.0
      %749 = vmatpush1.msra.mxu0 0.0
      %750 = vmatprep.subr.mxu0 0.0
      %751 = vmatpush1.msra.mxu0 0.0
      %752 = vmatprep.subr.mxu0 0.0
      %753 = vmatpush1.msra.mxu0 0.0
      %754 = vmatprep.subr.mxu0 0.0
      %755 = vmatpush1.msra.mxu0 0.0
      %756 = vmatprep.subr.mxu0 0.0
      %757 = vmatpush1.msra.mxu0 0.0
      %758 = vmatprep.subr.mxu0 0.0
      %759 = vmatpush1.msra.mxu0 0.0
      %760 = vmatprep.subr.mxu0 0.0
      %761 = vmatpush1.msra.mxu0 0.0
      %762 = vmatprep.subr.mxu0 0.0
      %763 = vmatpush1.msra.mxu0 0.0
      %764 = vmatprep.subr.mxu0 0.0
      %765 = vmatpush1.msra.mxu0 0.0
      %766 = vmatprep.subr.mxu0 0.0
      %767 = vmatpush1.msra.mxu0 0.0
      %768 = vmatprep.subr.mxu0 0.0
      %769 = vmatpush1.msra.mxu0 0.0
      %770 = vmatprep.subr.mxu0 0.0
      %771 = vmatpush1.msra.mxu0 0.0
      %772 = vmatprep.subr.mxu0 0.0
      %773 = vmatpush1.msra.mxu0 0.0
      %774 = vmatprep.subr.mxu0 0.0
      %775 = vmatpush1.msra.mxu0 0.0
      %776 = vmatprep.subr.mxu0 0.0
      %777 = vmatpush1.msra.mxu0 0.0
      %778 = vmatprep.subr.mxu0 0.0
      %779 = vmatpush1.msra.mxu0 0.0
      %780 = vmatprep.subr.mxu0 0.0
      %781 = vmatpush1.msra.mxu0 0.0
      %782 = vmatprep.subr.mxu0 0.0
      %783 = vmatpush1.msra.mxu0 0.0
      %784 = vmatprep.subr.mxu0 0.0
      %785 = vmatpush1.msra.mxu0 0.0
      %786 = vmatprep.subr.mxu0 0.0
      %787 = vmatpush1.msra.mxu0 0.0
      %788 = vmatprep.subr.mxu0 0.0
      %789 = vmatpush1.msra.mxu0 0.0
      %790 = vmatprep.subr.mxu0 0.0
      %791 = vmatpush1.msra.mxu0 0.0
      %792 = vmatprep.subr.mxu0 0.0
      %793 = vmatpush1.msra.mxu0 0.0
      %794 = vmatprep.subr.mxu0 0.0
      %795 = vmatpush1.msra.mxu0 0.0
      %796 = vmatprep.subr.mxu0 0.0
      %797 = vmatpush1.msra.mxu0 0.0
      %798 = vmatprep.subr.mxu0 0.0
      %799 = vmatpush1.msra.mxu0 0.0
      %800 = vmatprep.subr.mxu0 0.0
      %801 = vmatpush1.msra.mxu0 0.0
      %802 = vmatprep.subr.mxu0 0.0
      %803 = vmatpush1.msra.mxu0 0.0
      %804 = vmatprep.subr.mxu0 0.0
      %805 = vmatpush1.msra.mxu0 0.0
      %806 = vmatprep.subr.mxu0 0.0
      %807 = vmatpush1.msra.mxu0 0.0
      %808 = vmatprep.mubr.f32.mxu0 0.0
      %809 = vmatmul.mubr.f32.gmra.mrb[0].mxu0 %v694
      %v810 = vpop.f32.mrb[0].mxu0
      %v811 = vadd.f32 0.0, %v810
      %v812 = vpop.f32.mrb[0].mxu0
      %813 = vmatprep.mubr.f32.mxu0 0.0
      %814 = vmatmul.mubr.f32.gmra.mrb[0].mxu0 %v697
      %v815 = vpop.f32.mrb[0].mxu0
      %v816 = vadd.f32 0.0, %v815
      %v817 = vpop.f32.mrb[0].mxu0
      %818 = vmatprep.mubr.f32.mxu0 0.0
      %819 = vmatmul.mubr.f32.gmra.mrb[0].mxu0 %v700
      %v820 = vpop.f32.mrb[0].mxu0
      %v821 = vadd.f32 0.0, %v820
      %v822 = vpop.f32.mrb[0].mxu0
      %823 = vmatprep.mubr.f32.mxu0 0.0
      %824 = vmatmul.mubr.f32.gmra.mrb[0].mxu0 %v703
      %v825 = vpop.f32.mrb[0].mxu0
      %v826 = vadd.f32 0.0, %v825
      %v827 = vpop.f32.mrb[0].mxu0
      %828 = vmatprep.mubr.f32.mxu0 0.0
      %829 = vmatmul.mubr.f32.gmra.mrb[0].mxu0 %v706
      %v830 = vpop.f32.mrb[0].mxu0
      %v831 = vadd.f32 0.0, %v830
      %v832 = vpop.f32.mrb[0].mxu0
      %833 = vmatprep.mubr.f32.mxu0 0.0
      %834 = vmatmul.mubr.f32.gmra.mrb[0].mxu0 %v709
      %v835 = vpop.f32.mrb[0].mxu0
      %v836 = vadd.f32 0.0, %v835
      %v837 = vpop.f32.mrb[0].mxu0
      %838 = vmatprep.mubr.f32.mxu0 0.0
      %839 = vmatmul.mubr.f32.gmra.mrb[0].mxu0 %v712
      %v840 = vpop.f32.mrb[0].mxu0
      %v841 = vadd.f32 0.0, %v840
      %v842 = vpop.f32.mrb[0].mxu0
      %843 = vmatprep.mubr.f32.mxu0 0.0
      %844 = vmatmul.mubr.f32.gmra.mrb[0].mxu0 %v715
      %v845 = vpop.f32.mrb[0].mxu0
      %v846 = vadd.f32 0.0, %v845
      %v847 = vpop.f32.mrb[0].mxu0
      %848 = vmatprep.mubr.f32.mxu0 0.0
      %849 = vmatmul.mubr.f32.gmra.mrb[0].mxu0 %v718
      %v850 = vpop.f32.mrb[0].mxu0
      %v851 = vadd.f32 0.0, %v850
      %v852 = vpop.f32.mrb[0].mxu0
      %853 = vmatprep.mubr.f32.mxu0 0.0
      %854 = vmatmul.mubr.f32.gmra.mrb[0].mxu0 %v721
      %v855 = vpop.f32.mrb[0].mxu0
      %v856 = vadd.f32 0.0, %v855
      %v857 = vpop.f32.mrb[0].mxu0
      %858 = vmatprep.mubr.f32.mxu0 0.0
      %859 = vmatmul.mubr.f32.gmra.mrb[0].mxu0 %v724
      %v860 = vpop.f32.mrb[0].mxu0
      %v861 = vadd.f32 0.0, %v860
      %v862 = vpop.f32.mrb[0].mxu0
      %863 = vmatprep.mubr.f32.mxu0 0.0
      %864 = vmatmul.mubr.f32.gmra.mrb[0].mxu0 %v727
      %v865 = vpop.f32.mrb[0].mxu0
      %v866 = vadd.f32 0.0, %v865
      %v867 = vpop.f32.mrb[0].mxu0
      %868 = vmatprep.mubr.f32.mxu0 0.0
      %869 = vmatmul.mubr.f32.gmra.mrb[0].mxu0 %v730
      %v870 = vpop.f32.mrb[0].mxu0
      %v871 = vadd.f32 0.0, %v870
      %v872 = vpop.f32.mrb[0].mxu0
      %873 = vmatprep.mubr.f32.mxu0 0.0
      %874 = vmatmul.mubr.f32.gmra.mrb[0].mxu0 %v733
      %v875 = vpop.f32.mrb[0].mxu0
      %v876 = vadd.f32 0.0, %v875
      %v877 = vpop.f32.mrb[0].mxu0
      %878 = vmatprep.mubr.f32.mxu0 0.0
      %879 = vmatmul.mubr.f32.gmra.mrb[0].mxu0 %v736
      %v880 = vpop.f32.mrb[0].mxu0
      %v881 = vadd.f32 0.0, %v880
      %v882 = vpop.f32.mrb[0].mxu0
      %883 = vmatprep.mubr.f32.mxu0 0.0
      %884 = vmatmul.mubr.f32.gmra.mrb[0].mxu0 %v739
      %v885 = vpop.f32.mrb[0].mxu0
      %v886 = vadd.f32 0.0, %v885
      %v887 = vpop.f32.mrb[0].mxu0
      %888 = vdwg.mxu0
      %v889 = vadd.f32 %v595, %v811
      %v890 = vadd.f32 %v600, %v816
      %v891 = vadd.f32 %v605, %v821
      %v892 = vadd.f32 %v610, %v826
      %v893 = vadd.f32 %v615, %v831
      %v894 = vadd.f32 %v620, %v836
      %v895 = vadd.f32 %v625, %v841
      %v896 = vadd.f32 %v630, %v846
      %v897 = vadd.f32 %v635, %v851
      %v898 = vadd.f32 %v640, %v856
      %v899 = vadd.f32 %v645, %v861
      %v900 = vadd.f32 %v650, %v866
      %v901 = vadd.f32 %v655, %v871
      %v902 = vadd.f32 %v660, %v876
      %v903 = vadd.f32 %v665, %v881
      %v904 = vadd.f32 %v670, %v886
      %s905 = sadd.s32 %s240, 24
      %s906 = scalar_lea.vmem %s219, %s905
      %v907 = vld [vmem:[%s906] sm:$0xff]
      %v908 = vld [vmem:[%s906 + $0x8] sm:$0xff]
      %v909 = vld [vmem:[%s906 + $0x10] sm:$0xff]
      %v910 = vld [vmem:[%s906 + $0x18] sm:$0xff]
      %v911 = vld [vmem:[%s906 + $0x20] sm:$0xff]
      %v912 = vld [vmem:[%s906 + $0x28] sm:$0xff]
      %v913 = vld [vmem:[%s906 + $0x30] sm:$0xff]
      %v914 = vld [vmem:[%s906 + $0x38] sm:$0xff]
      %v915 = vld [vmem:[%s906 + $0x40] sm:$0xff]
      %v916 = vld [vmem:[%s906 + $0x48] sm:$0xff]
      %v917 = vld [vmem:[%s906 + $0x50] sm:$0xff]
      %v918 = vld [vmem:[%s906 + $0x58] sm:$0xff]
      %v919 = vld [vmem:[%s906 + $0x60] sm:$0xff]
      %v920 = vld [vmem:[%s906 + $0x68] sm:$0xff]
      %v921 = vld [vmem:[%s906 + $0x70] sm:$0xff]
      %v922 = vld [vmem:[%s906 + $0x78] sm:$0xff]
      %s923 = scalar_lea.vmem %s223, 12
      %v924 = vld [vmem:[%s923] sm:$0xf]
      %v926 = vsel %vm279, %v907, 0
      %v929 = vsel %vm279, %v908, 0
      %v932 = vsel %vm279, %v909, 0
      %v935 = vsel %vm279, %v910, 0
      %v938 = vsel %vm279, %v911, 0
      %v941 = vsel %vm279, %v912, 0
      %v944 = vsel %vm279, %v913, 0
      %v947 = vsel %vm279, %v914, 0
      %v950 = vsel %vm279, %v915, 0
      %v953 = vsel %vm279, %v916, 0
      %v956 = vsel %vm279, %v917, 0
      %v959 = vsel %vm279, %v918, 0
      %v962 = vsel %vm279, %v919, 0
      %v965 = vsel %vm279, %v920, 0
      %v968 = vsel %vm279, %v921, 0
      %v971 = vsel %vm279, %v922, 0
      %v974 = vsel %vm328, %v924, 0
      %976 = vmatprep.subr.mxu0 0.0
      %977 = vmatpush1.msra.mxu0 %v974
      %978 = vmatprep.subr.mxu0 0.0
      %979 = vmatpush1.msra.mxu0 0.0
      %980 = vmatprep.subr.mxu0 0.0
      %981 = vmatpush1.msra.mxu0 0.0
      %982 = vmatprep.subr.mxu0 0.0
      %983 = vmatpush1.msra.mxu0 0.0
      %984 = vmatprep.subr.mxu0 0.0
      %985 = vmatpush1.msra.mxu0 0.0
      %986 = vmatprep.subr.mxu0 0.0
      %987 = vmatpush1.msra.mxu0 0.0
      %988 = vmatprep.subr.mxu0 0.0
      %989 = vmatpush1.msra.mxu0 0.0
      %990 = vmatprep.subr.mxu0 0.0
      %991 = vmatpush1.msra.mxu0 0.0
      %992 = vmatprep.subr.mxu0 0.0
      %993 = vmatpush1.msra.mxu0 0.0
      %994 = vmatprep.subr.mxu0 0.0
      %995 = vmatpush1.msra.mxu0 0.0
      %996 = vmatprep.subr.mxu0 0.0
      %997 = vmatpush1.msra.mxu0 0.0
      %998 = vmatprep.subr.mxu0 0.0
      %999 = vmatpush1.msra.mxu0 0.0
      %1000 = vmatprep.subr.mxu0 0.0
      %1001 = vmatpush1.msra.mxu0 0.0
      %1002 = vmatprep.subr.mxu0 0.0
      %1003 = vmatpush1.msra.mxu0 0.0
      %1004 = vmatprep.subr.mxu0 0.0
      %1005 = vmatpush1.msra.mxu0 0.0
      %1006 = vmatprep.subr.mxu0 0.0
      %1007 = vmatpush1.msra.mxu0 0.0
      %1008 = vmatprep.subr.mxu0 0.0
      %1009 = vmatpush1.msra.mxu0 0.0
      %1010 = vmatprep.subr.mxu0 0.0
      %1011 = vmatpush1.msra.mxu0 0.0
      %1012 = vmatprep.subr.mxu0 0.0
      %1013 = vmatpush1.msra.mxu0 0.0
      %1014 = vmatprep.subr.mxu0 0.0
      %1015 = vmatpush1.msra.mxu0 0.0
      %1016 = vmatprep.subr.mxu0 0.0
      %1017 = vmatpush1.msra.mxu0 0.0
      %1018 = vmatprep.subr.mxu0 0.0
      %1019 = vmatpush1.msra.mxu0 0.0
      %1020 = vmatprep.subr.mxu0 0.0
      %1021 = vmatpush1.msra.mxu0 0.0
      %1022 = vmatprep.subr.mxu0 0.0
      %1023 = vmatpush1.msra.mxu0 0.0
      %1024 = vmatprep.subr.mxu0 0.0
      %1025 = vmatpush1.msra.mxu0 0.0
      %1026 = vmatprep.subr.mxu0 0.0
      %1027 = vmatpush1.msra.mxu0 0.0
      %1028 = vmatprep.subr.mxu0 0.0
      %1029 = vmatpush1.msra.mxu0 0.0
      %1030 = vmatprep.subr.mxu0 0.0
      %1031 = vmatpush1.msra.mxu0 0.0
      %1032 = vmatprep.subr.mxu0 0.0
      %1033 = vmatpush1.msra.mxu0 0.0
      %1034 = vmatprep.subr.mxu0 0.0
      %1035 = vmatpush1.msra.mxu0 0.0
      %1036 = vmatprep.subr.mxu0 0.0
      %1037 = vmatpush1.msra.mxu0 0.0
      %1038 = vmatprep.subr.mxu0 0.0
      %1039 = vmatpush1.msra.mxu0 0.0
      %1040 = vmatprep.mubr.f32.mxu0 0.0
      %1041 = vmatmul.mubr.f32.gmra.mrb[0].mxu0 %v926
      %v1042 = vpop.f32.mrb[0].mxu0
      %v1043 = vadd.f32 0.0, %v1042
      %v1044 = vpop.f32.mrb[0].mxu0
      %1045 = vmatprep.mubr.f32.mxu0 0.0
      %1046 = vmatmul.mubr.f32.gmra.mrb[0].mxu0 %v929
      %v1047 = vpop.f32.mrb[0].mxu0
      %v1048 = vadd.f32 0.0, %v1047
      %v1049 = vpop.f32.mrb[0].mxu0
      %1050 = vmatprep.mubr.f32.mxu0 0.0
      %1051 = vmatmul.mubr.f32.gmra.mrb[0].mxu0 %v932
      %v1052 = vpop.f32.mrb[0].mxu0
      %v1053 = vadd.f32 0.0, %v1052
      %v1054 = vpop.f32.mrb[0].mxu0
      %1055 = vmatprep.mubr.f32.mxu0 0.0
      %1056 = vmatmul.mubr.f32.gmra.mrb[0].mxu0 %v935
      %v1057 = vpop.f32.mrb[0].mxu0
      %v1058 = vadd.f32 0.0, %v1057
      %v1059 = vpop.f32.mrb[0].mxu0
      %1060 = vmatprep.mubr.f32.mxu0 0.0
      %1061 = vmatmul.mubr.f32.gmra.mrb[0].mxu0 %v938
      %v1062 = vpop.f32.mrb[0].mxu0
      %v1063 = vadd.f32 0.0, %v1062
      %v1064 = vpop.f32.mrb[0].mxu0
      %1065 = vmatprep.mubr.f32.mxu0 0.0
      %1066 = vmatmul.mubr.f32.gmra.mrb[0].mxu0 %v941
      %v1067 = vpop.f32.mrb[0].mxu0
      %v1068 = vadd.f32 0.0, %v1067
      %v1069 = vpop.f32.mrb[0].mxu0
      %1070 = vmatprep.mubr.f32.mxu0 0.0
      %1071 = vmatmul.mubr.f32.gmra.mrb[0].mxu0 %v944
      %v1072 = vpop.f32.mrb[0].mxu0
      %v1073 = vadd.f32 0.0, %v1072
      %v1074 = vpop.f32.mrb[0].mxu0
      %1075 = vmatprep.mubr.f32.mxu0 0.0
      %1076 = vmatmul.mubr.f32.gmra.mrb[0].mxu0 %v947
      %v1077 = vpop.f32.mrb[0].mxu0
      %v1078 = vadd.f32 0.0, %v1077
      %v1079 = vpop.f32.mrb[0].mxu0
      %1080 = vmatprep.mubr.f32.mxu0 0.0
      %1081 = vmatmul.mubr.f32.gmra.mrb[0].mxu0 %v950
      %v1082 = vpop.f32.mrb[0].mxu0
      %v1083 = vadd.f32 0.0, %v1082
      %v1084 = vpop.f32.mrb[0].mxu0
      %1085 = vmatprep.mubr.f32.mxu0 0.0
      %1086 = vmatmul.mubr.f32.gmra.mrb[0].mxu0 %v953
      %v1087 = vpop.f32.mrb[0].mxu0
      %v1088 = vadd.f32 0.0, %v1087
      %v1089 = vpop.f32.mrb[0].mxu0
      %1090 = vmatprep.mubr.f32.mxu0 0.0
      %1091 = vmatmul.mubr.f32.gmra.mrb[0].mxu0 %v956
      %v1092 = vpop.f32.mrb[0].mxu0
      %v1093 = vadd.f32 0.0, %v1092
      %v1094 = vpop.f32.mrb[0].mxu0
      %1095 = vmatprep.mubr.f32.mxu0 0.0
      %1096 = vmatmul.mubr.f32.gmra.mrb[0].mxu0 %v959
      %v1097 = vpop.f32.mrb[0].mxu0
      %v1098 = vadd.f32 0.0, %v1097
      %v1099 = vpop.f32.mrb[0].mxu0
      %1100 = vmatprep.mubr.f32.mxu0 0.0
      %1101 = vmatmul.mubr.f32.gmra.mrb[0].mxu0 %v962
      %v1102 = vpop.f32.mrb[0].mxu0
      %v1103 = vadd.f32 0.0, %v1102
      %v1104 = vpop.f32.mrb[0].mxu0
      %1105 = vmatprep.mubr.f32.mxu0 0.0
      %1106 = vmatmul.mubr.f32.gmra.mrb[0].mxu0 %v965
      %v1107 = vpop.f32.mrb[0].mxu0
      %v1108 = vadd.f32 0.0, %v1107
      %v1109 = vpop.f32.mrb[0].mxu0
      %1110 = vmatprep.mubr.f32.mxu0 0.0
      %1111 = vmatmul.mubr.f32.gmra.mrb[0].mxu0 %v968
      %v1112 = vpop.f32.mrb[0].mxu0
      %v1113 = vadd.f32 0.0, %v1112
      %v1114 = vpop.f32.mrb[0].mxu0
      %1115 = vmatprep.mubr.f32.mxu0 0.0
      %1116 = vmatmul.mubr.f32.gmra.mrb[0].mxu0 %v971
      %v1117 = vpop.f32.mrb[0].mxu0
      %v1118 = vadd.f32 0.0, %v1117
      %v1119 = vpop.f32.mrb[0].mxu0
      %1120 = vdwg.mxu0
      %v1121 = vadd.f32 %v889, %v1043
      %v1122 = vadd.f32 %v890, %v1048
      %v1123 = vadd.f32 %v891, %v1053
      %v1124 = vadd.f32 %v892, %v1058
      %v1125 = vadd.f32 %v893, %v1063
      %v1126 = vadd.f32 %v894, %v1068
      %v1127 = vadd.f32 %v895, %v1073
      %v1128 = vadd.f32 %v896, %v1078
      %v1129 = vadd.f32 %v897, %v1083
      %v1130 = vadd.f32 %v898, %v1088
      %v1131 = vadd.f32 %v899, %v1093
      %v1132 = vadd.f32 %v900, %v1098
      %v1133 = vadd.f32 %v901, %v1103
      %v1134 = vadd.f32 %v902, %v1108
      %v1135 = vadd.f32 %v903, %v1113
      %v1136 = vadd.f32 %v904, %v1118
      %s1137 = sadd.s32 %s240, 25
      %s1138 = scalar_lea.vmem %s219, %s1137
      %v1139 = vld [vmem:[%s1138] sm:$0xff]
      %v1140 = vld [vmem:[%s1138 + $0x8] sm:$0xff]
      %v1141 = vld [vmem:[%s1138 + $0x10] sm:$0xff]
      %v1142 = vld [vmem:[%s1138 + $0x18] sm:$0xff]
      %v1143 = vld [vmem:[%s1138 + $0x20] sm:$0xff]
      %v1144 = vld [vmem:[%s1138 + $0x28] sm:$0xff]
      %v1145 = vld [vmem:[%s1138 + $0x30] sm:$0xff]
      %v1146 = vld [vmem:[%s1138 + $0x38] sm:$0xff]
      %v1147 = vld [vmem:[%s1138 + $0x40] sm:$0xff]
      %v1148 = vld [vmem:[%s1138 + $0x48] sm:$0xff]
      %v1149 = vld [vmem:[%s1138 + $0x50] sm:$0xff]
      %v1150 = vld [vmem:[%s1138 + $0x58] sm:$0xff]
      %v1151 = vld [vmem:[%s1138 + $0x60] sm:$0xff]
      %v1152 = vld [vmem:[%s1138 + $0x68] sm:$0xff]
      %v1153 = vld [vmem:[%s1138 + $0x70] sm:$0xff]
      %v1154 = vld [vmem:[%s1138 + $0x78] sm:$0xff]
      %s1155 = scalar_lea.vmem %s223, 16
      %v1156 = vld [vmem:[%s1155] sm:$0xf]
      %v1158 = vsel %vm279, %v1139, 0
      %v1161 = vsel %vm279, %v1140, 0
      %v1164 = vsel %vm279, %v1141, 0
      %v1167 = vsel %vm279, %v1142, 0
      %v1170 = vsel %vm279, %v1143, 0
      %v1173 = vsel %vm279, %v1144, 0
      %v1176 = vsel %vm279, %v1145, 0
      %v1179 = vsel %vm279, %v1146, 0
      %v1182 = vsel %vm279, %v1147, 0
      %v1185 = vsel %vm279, %v1148, 0
      %v1188 = vsel %vm279, %v1149, 0
      %v1191 = vsel %vm279, %v1150, 0
      %v1194 = vsel %vm279, %v1151, 0
      %v1197 = vsel %vm279, %v1152, 0
      %v1200 = vsel %vm279, %v1153, 0
      %v1203 = vsel %vm279, %v1154, 0
      %v1206 = vsel %vm328, %v1156, 0
      %1208 = vmatprep.subr.mxu0 0.0
      %1209 = vmatpush1.msra.mxu0 %v1206
      %1210 = vmatprep.subr.mxu0 0.0
      %1211 = vmatpush1.msra.mxu0 0.0
      %1212 = vmatprep.subr.mxu0 0.0
      %1213 = vmatpush1.msra.mxu0 0.0
      %1214 = vmatprep.subr.mxu0 0.0
      %1215 = vmatpush1.msra.mxu0 0.0
      %1216 = vmatprep.subr.mxu0 0.0
      %1217 = vmatpush1.msra.mxu0 0.0
      %1218 = vmatprep.subr.mxu0 0.0
      %1219 = vmatpush1.msra.mxu0 0.0
      %1220 = vmatprep.subr.mxu0 0.0
      %1221 = vmatpush1.msra.mxu0 0.0
      %1222 = vmatprep.subr.mxu0 0.0
      %1223 = vmatpush1.msra.mxu0 0.0
      %1224 = vmatprep.subr.mxu0 0.0
      %1225 = vmatpush1.msra.mxu0 0.0
      %1226 = vmatprep.subr.mxu0 0.0
      %1227 = vmatpush1.msra.mxu0 0.0
      %1228 = vmatprep.subr.mxu0 0.0
      %1229 = vmatpush1.msra.mxu0 0.0
      %1230 = vmatprep.subr.mxu0 0.0
      %1231 = vmatpush1.msra.mxu0 0.0
      %1232 = vmatprep.subr.mxu0 0.0
      %1233 = vmatpush1.msra.mxu0 0.0
      %1234 = vmatprep.subr.mxu0 0.0
      %1235 = vmatpush1.msra.mxu0 0.0
      %1236 = vmatprep.subr.mxu0 0.0
      %1237 = vmatpush1.msra.mxu0 0.0
      %1238 = vmatprep.subr.mxu0 0.0
      %1239 = vmatpush1.msra.mxu0 0.0
      %1240 = vmatprep.subr.mxu0 0.0
      %1241 = vmatpush1.msra.mxu0 0.0
      %1242 = vmatprep.subr.mxu0 0.0
      %1243 = vmatpush1.msra.mxu0 0.0
      %1244 = vmatprep.subr.mxu0 0.0
      %1245 = vmatpush1.msra.mxu0 0.0
      %1246 = vmatprep.subr.mxu0 0.0
      %1247 = vmatpush1.msra.mxu0 0.0
      %1248 = vmatprep.subr.mxu0 0.0
      %1249 = vmatpush1.msra.mxu0 0.0
      %1250 = vmatprep.subr.mxu0 0.0
      %1251 = vmatpush1.msra.mxu0 0.0
      %1252 = vmatprep.subr.mxu0 0.0
      %1253 = vmatpush1.msra.mxu0 0.0
      %1254 = vmatprep.subr.mxu0 0.0
      %1255 = vmatpush1.msra.mxu0 0.0
      %1256 = vmatprep.subr.mxu0 0.0
      %1257 = vmatpush1.msra.mxu0 0.0
      %1258 = vmatprep.subr.mxu0 0.0
      %1259 = vmatpush1.msra.mxu0 0.0
      %1260 = vmatprep.subr.mxu0 0.0
      %1261 = vmatpush1.msra.mxu0 0.0
      %1262 = vmatprep.subr.mxu0 0.0
      %1263 = vmatpush1.msra.mxu0 0.0
      %1264 = vmatprep.subr.mxu0 0.0
      %1265 = vmatpush1.msra.mxu0 0.0
      %1266 = vmatprep.subr.mxu0 0.0
      %1267 = vmatpush1.msra.mxu0 0.0
      %1268 = vmatprep.subr.mxu0 0.0
      %1269 = vmatpush1.msra.mxu0 0.0
      %1270 = vmatprep.subr.mxu0 0.0
      %1271 = vmatpush1.msra.mxu0 0.0
      %1272 = vmatprep.mubr.f32.mxu0 0.0
      %1273 = vmatmul.mubr.f32.gmra.mrb[0].mxu0 %v1158
      %v1274 = vpop.f32.mrb[0].mxu0
      %v1275 = vadd.f32 0.0, %v1274
      %v1276 = vpop.f32.mrb[0].mxu0
      %1277 = vmatprep.mubr.f32.mxu0 0.0
      %1278 = vmatmul.mubr.f32.gmra.mrb[0].mxu0 %v1161
      %v1279 = vpop.f32.mrb[0].mxu0
      %v1280 = vadd.f32 0.0, %v1279
      %v1281 = vpop.f32.mrb[0].mxu0
      %1282 = vmatprep.mubr.f32.mxu0 0.0
      %1283 = vmatmul.mubr.f32.gmra.mrb[0].mxu0 %v1164
      %v1284 = vpop.f32.mrb[0].mxu0
      %v1285 = vadd.f32 0.0, %v1284
      %v1286 = vpop.f32.mrb[0].mxu0
      %1287 = vmatprep.mubr.f32.mxu0 0.0
      %1288 = vmatmul.mubr.f32.gmra.mrb[0].mxu0 %v1167
      %v1289 = vpop.f32.mrb[0].mxu0
      %v1290 = vadd.f32 0.0, %v1289
      %v1291 = vpop.f32.mrb[0].mxu0
      %1292 = vmatprep.mubr.f32.mxu0 0.0
      %1293 = vmatmul.mubr.f32.gmra.mrb[0].mxu0 %v1170
      %v1294 = vpop.f32.mrb[0].mxu0
      %v1295 = vadd.f32 0.0, %v1294
      %v1296 = vpop.f32.mrb[0].mxu0
      %1297 = vmatprep.mubr.f32.mxu0 0.0
      %1298 = vmatmul.mubr.f32.gmra.mrb[0].mxu0 %v1173
      %v1299 = vpop.f32.mrb[0].mxu0
      %v1300 = vadd.f32 0.0, %v1299
      %v1301 = vpop.f32.mrb[0].mxu0
      %1302 = vmatprep.mubr.f32.mxu0 0.0
      %1303 = vmatmul.mubr.f32.gmra.mrb[0].mxu0 %v1176
      %v1304 = vpop.f32.mrb[0].mxu0
      %v1305 = vadd.f32 0.0, %v1304
      %v1306 = vpop.f32.mrb[0].mxu0
      %1307 = vmatprep.mubr.f32.mxu0 0.0
      %1308 = vmatmul.mubr.f32.gmra.mrb[0].mxu0 %v1179
      %v1309 = vpop.f32.mrb[0].mxu0
      %v1310 = vadd.f32 0.0, %v1309
      %v1311 = vpop.f32.mrb[0].mxu0
      %1312 = vmatprep.mubr.f32.mxu0 0.0
      %1313 = vmatmul.mubr.f32.gmra.mrb[0].mxu0 %v1182
      %v1314 = vpop.f32.mrb[0].mxu0
      %v1315 = vadd.f32 0.0, %v1314
      %v1316 = vpop.f32.mrb[0].mxu0
      %1317 = vmatprep.mubr.f32.mxu0 0.0
      %1318 = vmatmul.mubr.f32.gmra.mrb[0].mxu0 %v1185
      %v1319 = vpop.f32.mrb[0].mxu0
      %v1320 = vadd.f32 0.0, %v1319
      %v1321 = vpop.f32.mrb[0].mxu0
      %1322 = vmatprep.mubr.f32.mxu0 0.0
      %1323 = vmatmul.mubr.f32.gmra.mrb[0].mxu0 %v1188
      %v1324 = vpop.f32.mrb[0].mxu0
      %v1325 = vadd.f32 0.0, %v1324
      %v1326 = vpop.f32.mrb[0].mxu0
      %1327 = vmatprep.mubr.f32.mxu0 0.0
      %1328 = vmatmul.mubr.f32.gmra.mrb[0].mxu0 %v1191
      %v1329 = vpop.f32.mrb[0].mxu0
      %v1330 = vadd.f32 0.0, %v1329
      %v1331 = vpop.f32.mrb[0].mxu0
      %1332 = vmatprep.mubr.f32.mxu0 0.0
      %1333 = vmatmul.mubr.f32.gmra.mrb[0].mxu0 %v1194
      %v1334 = vpop.f32.mrb[0].mxu0
      %v1335 = vadd.f32 0.0, %v1334
      %v1336 = vpop.f32.mrb[0].mxu0
      %1337 = vmatprep.mubr.f32.mxu0 0.0
      %1338 = vmatmul.mubr.f32.gmra.mrb[0].mxu0 %v1197
      %v1339 = vpop.f32.mrb[0].mxu0
      %v1340 = vadd.f32 0.0, %v1339
      %v1341 = vpop.f32.mrb[0].mxu0
      %1342 = vmatprep.mubr.f32.mxu0 0.0
      %1343 = vmatmul.mubr.f32.gmra.mrb[0].mxu0 %v1200
      %v1344 = vpop.f32.mrb[0].mxu0
      %v1345 = vadd.f32 0.0, %v1344
      %v1346 = vpop.f32.mrb[0].mxu0
      %1347 = vmatprep.mubr.f32.mxu0 0.0
      %1348 = vmatmul.mubr.f32.gmra.mrb[0].mxu0 %v1203
      %v1349 = vpop.f32.mrb[0].mxu0
      %v1350 = vadd.f32 0.0, %v1349
      %v1351 = vpop.f32.mrb[0].mxu0
      %1352 = vdwg.mxu0
      %v1353 = vadd.f32 %v1121, %v1275
      %v1354 = vadd.f32 %v1122, %v1280
      %v1355 = vadd.f32 %v1123, %v1285
      %v1356 = vadd.f32 %v1124, %v1290
      %v1357 = vadd.f32 %v1125, %v1295
      %v1358 = vadd.f32 %v1126, %v1300
      %v1359 = vadd.f32 %v1127, %v1305
      %v1360 = vadd.f32 %v1128, %v1310
      %v1361 = vadd.f32 %v1129, %v1315
      %v1362 = vadd.f32 %v1130, %v1320
      %v1363 = vadd.f32 %v1131, %v1325
      %v1364 = vadd.f32 %v1132, %v1330
      %v1365 = vadd.f32 %v1133, %v1335
      %v1366 = vadd.f32 %v1134, %v1340
      %v1367 = vadd.f32 %v1135, %v1345
      %v1368 = vadd.f32 %v1136, %v1350
      %s1369 = sadd.s32 %s240, 26
      %s1370 = scalar_lea.vmem %s219, %s1369
      %v1371 = vld [vmem:[%s1370] sm:$0xff]
      %v1372 = vld [vmem:[%s1370 + $0x8] sm:$0xff]
      %v1373 = vld [vmem:[%s1370 + $0x10] sm:$0xff]
      %v1374 = vld [vmem:[%s1370 + $0x18] sm:$0xff]
      %v1375 = vld [vmem:[%s1370 + $0x20] sm:$0xff]
      %v1376 = vld [vmem:[%s1370 + $0x28] sm:$0xff]
      %v1377 = vld [vmem:[%s1370 + $0x30] sm:$0xff]
      %v1378 = vld [vmem:[%s1370 + $0x38] sm:$0xff]
      %v1379 = vld [vmem:[%s1370 + $0x40] sm:$0xff]
      %v1380 = vld [vmem:[%s1370 + $0x48] sm:$0xff]
      %v1381 = vld [vmem:[%s1370 + $0x50] sm:$0xff]
      %v1382 = vld [vmem:[%s1370 + $0x58] sm:$0xff]
      %v1383 = vld [vmem:[%s1370 + $0x60] sm:$0xff]
      %v1384 = vld [vmem:[%s1370 + $0x68] sm:$0xff]
      %v1385 = vld [vmem:[%s1370 + $0x70] sm:$0xff]
      %v1386 = vld [vmem:[%s1370 + $0x78] sm:$0xff]
      %s1387 = scalar_lea.vmem %s223, 20
      %v1388 = vld [vmem:[%s1387] sm:$0xf]
      %v1390 = vsel %vm279, %v1371, 0
      %v1393 = vsel %vm279, %v1372, 0
      %v1396 = vsel %vm279, %v1373, 0
      %v1399 = vsel %vm279, %v1374, 0
      %v1402 = vsel %vm279, %v1375, 0
      %v1405 = vsel %vm279, %v1376, 0
      %v1408 = vsel %vm279, %v1377, 0
      %v1411 = vsel %vm279, %v1378, 0
      %v1414 = vsel %vm279, %v1379, 0
      %v1417 = vsel %vm279, %v1380, 0
      %v1420 = vsel %vm279, %v1381, 0
      %v1423 = vsel %vm279, %v1382, 0
      %v1426 = vsel %vm279, %v1383, 0
      %v1429 = vsel %vm279, %v1384, 0
      %v1432 = vsel %vm279, %v1385, 0
      %v1435 = vsel %vm279, %v1386, 0
      %v1438 = vsel %vm328, %v1388, 0
      %1440 = vmatprep.subr.mxu0 0.0
      %1441 = vmatpush1.msra.mxu0 %v1438
      %1442 = vmatprep.subr.mxu0 0.0
      %1443 = vmatpush1.msra.mxu0 0.0
      %1444 = vmatprep.subr.mxu0 0.0
      %1445 = vmatpush1.msra.mxu0 0.0
      %1446 = vmatprep.subr.mxu0 0.0
      %1447 = vmatpush1.msra.mxu0 0.0
      %1448 = vmatprep.subr.mxu0 0.0
      %1449 = vmatpush1.msra.mxu0 0.0
      %1450 = vmatprep.subr.mxu0 0.0
      %1451 = vmatpush1.msra.mxu0 0.0
      %1452 = vmatprep.subr.mxu0 0.0
      %1453 = vmatpush1.msra.mxu0 0.0
      %1454 = vmatprep.subr.mxu0 0.0
      %1455 = vmatpush1.msra.mxu0 0.0
      %1456 = vmatprep.subr.mxu0 0.0
      %1457 = vmatpush1.msra.mxu0 0.0
      %1458 = vmatprep.subr.mxu0 0.0
      %1459 = vmatpush1.msra.mxu0 0.0
      %1460 = vmatprep.subr.mxu0 0.0
      %1461 = vmatpush1.msra.mxu0 0.0
      %1462 = vmatprep.subr.mxu0 0.0
      %1463 = vmatpush1.msra.mxu0 0.0
      %1464 = vmatprep.subr.mxu0 0.0
      %1465 = vmatpush1.msra.mxu0 0.0
      %1466 = vmatprep.subr.mxu0 0.0
      %1467 = vmatpush1.msra.mxu0 0.0
      %1468 = vmatprep.subr.mxu0 0.0
      %1469 = vmatpush1.msra.mxu0 0.0
      %1470 = vmatprep.subr.mxu0 0.0
      %1471 = vmatpush1.msra.mxu0 0.0
      %1472 = vmatprep.subr.mxu0 0.0
      %1473 = vmatpush1.msra.mxu0 0.0
      %1474 = vmatprep.subr.mxu0 0.0
      %1475 = vmatpush1.msra.mxu0 0.0
      %1476 = vmatprep.subr.mxu0 0.0
      %1477 = vmatpush1.msra.mxu0 0.0
      %1478 = vmatprep.subr.mxu0 0.0
      %1479 = vmatpush1.msra.mxu0 0.0
      %1480 = vmatprep.subr.mxu0 0.0
      %1481 = vmatpush1.msra.mxu0 0.0
      %1482 = vmatprep.subr.mxu0 0.0
      %1483 = vmatpush1.msra.mxu0 0.0
      %1484 = vmatprep.subr.mxu0 0.0
      %1485 = vmatpush1.msra.mxu0 0.0
      %1486 = vmatprep.subr.mxu0 0.0
      %1487 = vmatpush1.msra.mxu0 0.0
      %1488 = vmatprep.subr.mxu0 0.0
      %1489 = vmatpush1.msra.mxu0 0.0
      %1490 = vmatprep.subr.mxu0 0.0
      %1491 = vmatpush1.msra.mxu0 0.0
      %1492 = vmatprep.subr.mxu0 0.0
      %1493 = vmatpush1.msra.mxu0 0.0
      %1494 = vmatprep.subr.mxu0 0.0
      %1495 = vmatpush1.msra.mxu0 0.0
      %1496 = vmatprep.subr.mxu0 0.0
      %1497 = vmatpush1.msra.mxu0 0.0
      %1498 = vmatprep.subr.mxu0 0.0
      %1499 = vmatpush1.msra.mxu0 0.0
      %1500 = vmatprep.subr.mxu0 0.0
      %1501 = vmatpush1.msra.mxu0 0.0
      %1502 = vmatprep.subr.mxu0 0.0
      %1503 = vmatpush1.msra.mxu0 0.0
      %1504 = vmatprep.mubr.f32.mxu0 0.0
      %1505 = vmatmul.mubr.f32.gmra.mrb[0].mxu0 %v1390
      %v1506 = vpop.f32.mrb[0].mxu0
      %v1507 = vadd.f32 0.0, %v1506
      %v1508 = vpop.f32.mrb[0].mxu0
      %1509 = vmatprep.mubr.f32.mxu0 0.0
      %1510 = vmatmul.mubr.f32.gmra.mrb[0].mxu0 %v1393
      %v1511 = vpop.f32.mrb[0].mxu0
      %v1512 = vadd.f32 0.0, %v1511
      %v1513 = vpop.f32.mrb[0].mxu0
      %1514 = vmatprep.mubr.f32.mxu0 0.0
      %1515 = vmatmul.mubr.f32.gmra.mrb[0].mxu0 %v1396
      %v1516 = vpop.f32.mrb[0].mxu0
      %v1517 = vadd.f32 0.0, %v1516
      %v1518 = vpop.f32.mrb[0].mxu0
      %1519 = vmatprep.mubr.f32.mxu0 0.0
      %1520 = vmatmul.mubr.f32.gmra.mrb[0].mxu0 %v1399
      %v1521 = vpop.f32.mrb[0].mxu0
      %v1522 = vadd.f32 0.0, %v1521
      %v1523 = vpop.f32.mrb[0].mxu0
      %1524 = vmatprep.mubr.f32.mxu0 0.0
      %1525 = vmatmul.mubr.f32.gmra.mrb[0].mxu0 %v1402
      %v1526 = vpop.f32.mrb[0].mxu0
      %v1527 = vadd.f32 0.0, %v1526
      %v1528 = vpop.f32.mrb[0].mxu0
      %1529 = vmatprep.mubr.f32.mxu0 0.0
      %1530 = vmatmul.mubr.f32.gmra.mrb[0].mxu0 %v1405
      %v1531 = vpop.f32.mrb[0].mxu0
      %v1532 = vadd.f32 0.0, %v1531
      %v1533 = vpop.f32.mrb[0].mxu0
      %1534 = vmatprep.mubr.f32.mxu0 0.0
      %1535 = vmatmul.mubr.f32.gmra.mrb[0].mxu0 %v1408
      %v1536 = vpop.f32.mrb[0].mxu0
      %v1537 = vadd.f32 0.0, %v1536
      %v1538 = vpop.f32.mrb[0].mxu0
      %1539 = vmatprep.mubr.f32.mxu0 0.0
      %1540 = vmatmul.mubr.f32.gmra.mrb[0].mxu0 %v1411
      %v1541 = vpop.f32.mrb[0].mxu0
      %v1542 = vadd.f32 0.0, %v1541
      %v1543 = vpop.f32.mrb[0].mxu0
      %1544 = vmatprep.mubr.f32.mxu0 0.0
      %1545 = vmatmul.mubr.f32.gmra.mrb[0].mxu0 %v1414
      %v1546 = vpop.f32.mrb[0].mxu0
      %v1547 = vadd.f32 0.0, %v1546
      %v1548 = vpop.f32.mrb[0].mxu0
      %1549 = vmatprep.mubr.f32.mxu0 0.0
      %1550 = vmatmul.mubr.f32.gmra.mrb[0].mxu0 %v1417
      %v1551 = vpop.f32.mrb[0].mxu0
      %v1552 = vadd.f32 0.0, %v1551
      %v1553 = vpop.f32.mrb[0].mxu0
      %1554 = vmatprep.mubr.f32.mxu0 0.0
      %1555 = vmatmul.mubr.f32.gmra.mrb[0].mxu0 %v1420
      %v1556 = vpop.f32.mrb[0].mxu0
      %v1557 = vadd.f32 0.0, %v1556
      %v1558 = vpop.f32.mrb[0].mxu0
      %1559 = vmatprep.mubr.f32.mxu0 0.0
      %1560 = vmatmul.mubr.f32.gmra.mrb[0].mxu0 %v1423
      %v1561 = vpop.f32.mrb[0].mxu0
      %v1562 = vadd.f32 0.0, %v1561
      %v1563 = vpop.f32.mrb[0].mxu0
      %1564 = vmatprep.mubr.f32.mxu0 0.0
      %1565 = vmatmul.mubr.f32.gmra.mrb[0].mxu0 %v1426
      %v1566 = vpop.f32.mrb[0].mxu0
      %v1567 = vadd.f32 0.0, %v1566
      %v1568 = vpop.f32.mrb[0].mxu0
      %1569 = vmatprep.mubr.f32.mxu0 0.0
      %1570 = vmatmul.mubr.f32.gmra.mrb[0].mxu0 %v1429
      %v1571 = vpop.f32.mrb[0].mxu0
      %v1572 = vadd.f32 0.0, %v1571
      %v1573 = vpop.f32.mrb[0].mxu0
      %1574 = vmatprep.mubr.f32.mxu0 0.0
      %1575 = vmatmul.mubr.f32.gmra.mrb[0].mxu0 %v1432
      %v1576 = vpop.f32.mrb[0].mxu0
      %v1577 = vadd.f32 0.0, %v1576
      %v1578 = vpop.f32.mrb[0].mxu0
      %1579 = vmatprep.mubr.f32.mxu0 0.0
      %1580 = vmatmul.mubr.f32.gmra.mrb[0].mxu0 %v1435
      %v1581 = vpop.f32.mrb[0].mxu0
      %v1582 = vadd.f32 0.0, %v1581
      %v1583 = vpop.f32.mrb[0].mxu0
      %1584 = vdwg.mxu0
      %v1585 = vadd.f32 %v1353, %v1507
      %v1586 = vadd.f32 %v1354, %v1512
      %v1587 = vadd.f32 %v1355, %v1517
      %v1588 = vadd.f32 %v1356, %v1522
      %v1589 = vadd.f32 %v1357, %v1527
      %v1590 = vadd.f32 %v1358, %v1532
      %v1591 = vadd.f32 %v1359, %v1537
      %v1592 = vadd.f32 %v1360, %v1542
      %v1593 = vadd.f32 %v1361, %v1547
      %v1594 = vadd.f32 %v1362, %v1552
      %v1595 = vadd.f32 %v1363, %v1557
      %v1596 = vadd.f32 %v1364, %v1562
      %v1597 = vadd.f32 %v1365, %v1567
      %v1598 = vadd.f32 %v1366, %v1572
      %v1599 = vadd.f32 %v1367, %v1577
      %v1600 = vadd.f32 %v1368, %v1582
      %s1601 = sadd.s32 %s240, 48
      %s1602 = scalar_lea.vmem %s219, %s1601
      %v1603 = vld [vmem:[%s1602] sm:$0xff]
      %v1604 = vld [vmem:[%s1602 + $0x8] sm:$0xff]
      %v1605 = vld [vmem:[%s1602 + $0x10] sm:$0xff]
      %v1606 = vld [vmem:[%s1602 + $0x18] sm:$0xff]
      %v1607 = vld [vmem:[%s1602 + $0x20] sm:$0xff]
      %v1608 = vld [vmem:[%s1602 + $0x28] sm:$0xff]
      %v1609 = vld [vmem:[%s1602 + $0x30] sm:$0xff]
      %v1610 = vld [vmem:[%s1602 + $0x38] sm:$0xff]
      %v1611 = vld [vmem:[%s1602 + $0x40] sm:$0xff]
      %v1612 = vld [vmem:[%s1602 + $0x48] sm:$0xff]
      %v1613 = vld [vmem:[%s1602 + $0x50] sm:$0xff]
      %v1614 = vld [vmem:[%s1602 + $0x58] sm:$0xff]
      %v1615 = vld [vmem:[%s1602 + $0x60] sm:$0xff]
      %v1616 = vld [vmem:[%s1602 + $0x68] sm:$0xff]
      %v1617 = vld [vmem:[%s1602 + $0x70] sm:$0xff]
      %v1618 = vld [vmem:[%s1602 + $0x78] sm:$0xff]
      %s1619 = scalar_lea.vmem %s223, 24
      %v1620 = vld [vmem:[%s1619] sm:$0xf]
      %v1622 = vsel %vm279, %v1603, 0
      %v1625 = vsel %vm279, %v1604, 0
      %v1628 = vsel %vm279, %v1605, 0
      %v1631 = vsel %vm279, %v1606, 0
      %v1634 = vsel %vm279, %v1607, 0
      %v1637 = vsel %vm279, %v1608, 0
      %v1640 = vsel %vm279, %v1609, 0
      %v1643 = vsel %vm279, %v1610, 0
      %v1646 = vsel %vm279, %v1611, 0
      %v1649 = vsel %vm279, %v1612, 0
      %v1652 = vsel %vm279, %v1613, 0
      %v1655 = vsel %vm279, %v1614, 0
      %v1658 = vsel %vm279, %v1615, 0
      %v1661 = vsel %vm279, %v1616, 0
      %v1664 = vsel %vm279, %v1617, 0
      %v1667 = vsel %vm279, %v1618, 0
      %v1670 = vsel %vm328, %v1620, 0
      %1672 = vmatprep.subr.mxu0 0.0
      %1673 = vmatpush1.msra.mxu0 %v1670
      %1674 = vmatprep.subr.mxu0 0.0
      %1675 = vmatpush1.msra.mxu0 0.0
      %1676 = vmatprep.subr.mxu0 0.0
      %1677 = vmatpush1.msra.mxu0 0.0
      %1678 = vmatprep.subr.mxu0 0.0
      %1679 = vmatpush1.msra.mxu0 0.0
      %1680 = vmatprep.subr.mxu0 0.0
      %1681 = vmatpush1.msra.mxu0 0.0
      %1682 = vmatprep.subr.mxu0 0.0
      %1683 = vmatpush1.msra.mxu0 0.0
      %1684 = vmatprep.subr.mxu0 0.0
      %1685 = vmatpush1.msra.mxu0 0.0
      %1686 = vmatprep.subr.mxu0 0.0
      %1687 = vmatpush1.msra.mxu0 0.0
      %1688 = vmatprep.subr.mxu0 0.0
      %1689 = vmatpush1.msra.mxu0 0.0
      %1690 = vmatprep.subr.mxu0 0.0
      %1691 = vmatpush1.msra.mxu0 0.0
      %1692 = vmatprep.subr.mxu0 0.0
      %1693 = vmatpush1.msra.mxu0 0.0
      %1694 = vmatprep.subr.mxu0 0.0
      %1695 = vmatpush1.msra.mxu0 0.0
      %1696 = vmatprep.subr.mxu0 0.0
      %1697 = vmatpush1.msra.mxu0 0.0
      %1698 = vmatprep.subr.mxu0 0.0
      %1699 = vmatpush1.msra.mxu0 0.0
      %1700 = vmatprep.subr.mxu0 0.0
      %1701 = vmatpush1.msra.mxu0 0.0
      %1702 = vmatprep.subr.mxu0 0.0
      %1703 = vmatpush1.msra.mxu0 0.0
      %1704 = vmatprep.subr.mxu0 0.0
      %1705 = vmatpush1.msra.mxu0 0.0
      %1706 = vmatprep.subr.mxu0 0.0
      %1707 = vmatpush1.msra.mxu0 0.0
      %1708 = vmatprep.subr.mxu0 0.0
      %1709 = vmatpush1.msra.mxu0 0.0
      %1710 = vmatprep.subr.mxu0 0.0
      %1711 = vmatpush1.msra.mxu0 0.0
      %1712 = vmatprep.subr.mxu0 0.0
      %1713 = vmatpush1.msra.mxu0 0.0
      %1714 = vmatprep.subr.mxu0 0.0
      %1715 = vmatpush1.msra.mxu0 0.0
      %1716 = vmatprep.subr.mxu0 0.0
      %1717 = vmatpush1.msra.mxu0 0.0
      %1718 = vmatprep.subr.mxu0 0.0
      %1719 = vmatpush1.msra.mxu0 0.0
      %1720 = vmatprep.subr.mxu0 0.0
      %1721 = vmatpush1.msra.mxu0 0.0
      %1722 = vmatprep.subr.mxu0 0.0
      %1723 = vmatpush1.msra.mxu0 0.0
      %1724 = vmatprep.subr.mxu0 0.0
      %1725 = vmatpush1.msra.mxu0 0.0
      %1726 = vmatprep.subr.mxu0 0.0
      %1727 = vmatpush1.msra.mxu0 0.0
      %1728 = vmatprep.subr.mxu0 0.0
      %1729 = vmatpush1.msra.mxu0 0.0
      %1730 = vmatprep.subr.mxu0 0.0
      %1731 = vmatpush1.msra.mxu0 0.0
      %1732 = vmatprep.subr.mxu0 0.0
      %1733 = vmatpush1.msra.mxu0 0.0
      %1734 = vmatprep.subr.mxu0 0.0
      %1735 = vmatpush1.msra.mxu0 0.0
      %1736 = vmatprep.mubr.f32.mxu0 0.0
      %1737 = vmatmul.mubr.f32.gmra.mrb[0].mxu0 %v1622
      %v1738 = vpop.f32.mrb[0].mxu0
      %v1739 = vadd.f32 0.0, %v1738
      %v1740 = vpop.f32.mrb[0].mxu0
      %1741 = vmatprep.mubr.f32.mxu0 0.0
      %1742 = vmatmul.mubr.f32.gmra.mrb[0].mxu0 %v1625
      %v1743 = vpop.f32.mrb[0].mxu0
      %v1744 = vadd.f32 0.0, %v1743
      %v1745 = vpop.f32.mrb[0].mxu0
      %1746 = vmatprep.mubr.f32.mxu0 0.0
      %1747 = vmatmul.mubr.f32.gmra.mrb[0].mxu0 %v1628
      %v1748 = vpop.f32.mrb[0].mxu0
      %v1749 = vadd.f32 0.0, %v1748
      %v1750 = vpop.f32.mrb[0].mxu0
      %1751 = vmatprep.mubr.f32.mxu0 0.0
      %1752 = vmatmul.mubr.f32.gmra.mrb[0].mxu0 %v1631
      %v1753 = vpop.f32.mrb[0].mxu0
      %v1754 = vadd.f32 0.0, %v1753
      %v1755 = vpop.f32.mrb[0].mxu0
      %1756 = vmatprep.mubr.f32.mxu0 0.0
      %1757 = vmatmul.mubr.f32.gmra.mrb[0].mxu0 %v1634
      %v1758 = vpop.f32.mrb[0].mxu0
      %v1759 = vadd.f32 0.0, %v1758
      %v1760 = vpop.f32.mrb[0].mxu0
      %1761 = vmatprep.mubr.f32.mxu0 0.0
      %1762 = vmatmul.mubr.f32.gmra.mrb[0].mxu0 %v1637
      %v1763 = vpop.f32.mrb[0].mxu0
      %v1764 = vadd.f32 0.0, %v1763
      %v1765 = vpop.f32.mrb[0].mxu0
      %1766 = vmatprep.mubr.f32.mxu0 0.0
      %1767 = vmatmul.mubr.f32.gmra.mrb[0].mxu0 %v1640
      %v1768 = vpop.f32.mrb[0].mxu0
      %v1769 = vadd.f32 0.0, %v1768
      %v1770 = vpop.f32.mrb[0].mxu0
      %1771 = vmatprep.mubr.f32.mxu0 0.0
      %1772 = vmatmul.mubr.f32.gmra.mrb[0].mxu0 %v1643
      %v1773 = vpop.f32.mrb[0].mxu0
      %v1774 = vadd.f32 0.0, %v1773
      %v1775 = vpop.f32.mrb[0].mxu0
      %1776 = vmatprep.mubr.f32.mxu0 0.0
      %1777 = vmatmul.mubr.f32.gmra.mrb[0].mxu0 %v1646
      %v1778 = vpop.f32.mrb[0].mxu0
      %v1779 = vadd.f32 0.0, %v1778
      %v1780 = vpop.f32.mrb[0].mxu0
      %1781 = vmatprep.mubr.f32.mxu0 0.0
      %1782 = vmatmul.mubr.f32.gmra.mrb[0].mxu0 %v1649
      %v1783 = vpop.f32.mrb[0].mxu0
      %v1784 = vadd.f32 0.0, %v1783
      %v1785 = vpop.f32.mrb[0].mxu0
      %1786 = vmatprep.mubr.f32.mxu0 0.0
      %1787 = vmatmul.mubr.f32.gmra.mrb[0].mxu0 %v1652
      %v1788 = vpop.f32.mrb[0].mxu0
      %v1789 = vadd.f32 0.0, %v1788
      %v1790 = vpop.f32.mrb[0].mxu0
      %1791 = vmatprep.mubr.f32.mxu0 0.0
      %1792 = vmatmul.mubr.f32.gmra.mrb[0].mxu0 %v1655
      %v1793 = vpop.f32.mrb[0].mxu0
      %v1794 = vadd.f32 0.0, %v1793
      %v1795 = vpop.f32.mrb[0].mxu0
      %1796 = vmatprep.mubr.f32.mxu0 0.0
      %1797 = vmatmul.mubr.f32.gmra.mrb[0].mxu0 %v1658
      %v1798 = vpop.f32.mrb[0].mxu0
      %v1799 = vadd.f32 0.0, %v1798
      %v1800 = vpop.f32.mrb[0].mxu0
      %1801 = vmatprep.mubr.f32.mxu0 0.0
      %1802 = vmatmul.mubr.f32.gmra.mrb[0].mxu0 %v1661
      %v1803 = vpop.f32.mrb[0].mxu0
      %v1804 = vadd.f32 0.0, %v1803
      %v1805 = vpop.f32.mrb[0].mxu0
      %1806 = vmatprep.mubr.f32.mxu0 0.0
      %1807 = vmatmul.mubr.f32.gmra.mrb[0].mxu0 %v1664
      %v1808 = vpop.f32.mrb[0].mxu0
      %v1809 = vadd.f32 0.0, %v1808
      %v1810 = vpop.f32.mrb[0].mxu0
      %1811 = vmatprep.mubr.f32.mxu0 0.0
      %1812 = vmatmul.mubr.f32.gmra.mrb[0].mxu0 %v1667
      %v1813 = vpop.f32.mrb[0].mxu0
      %v1814 = vadd.f32 0.0, %v1813
      %v1815 = vpop.f32.mrb[0].mxu0
      %1816 = vdwg.mxu0
      %v1817 = vadd.f32 %v1585, %v1739
      %v1818 = vadd.f32 %v1586, %v1744
      %v1819 = vadd.f32 %v1587, %v1749
      %v1820 = vadd.f32 %v1588, %v1754
      %v1821 = vadd.f32 %v1589, %v1759
      %v1822 = vadd.f32 %v1590, %v1764
      %v1823 = vadd.f32 %v1591, %v1769
      %v1824 = vadd.f32 %v1592, %v1774
      %v1825 = vadd.f32 %v1593, %v1779
      %v1826 = vadd.f32 %v1594, %v1784
      %v1827 = vadd.f32 %v1595, %v1789
      %v1828 = vadd.f32 %v1596, %v1794
      %v1829 = vadd.f32 %v1597, %v1799
      %v1830 = vadd.f32 %v1598, %v1804
      %v1831 = vadd.f32 %v1599, %v1809
      %v1832 = vadd.f32 %v1600, %v1814
      %s1833 = sadd.s32 %s240, 49
      %s1834 = scalar_lea.vmem %s219, %s1833
      %v1835 = vld [vmem:[%s1834] sm:$0xff]
      %v1836 = vld [vmem:[%s1834 + $0x8] sm:$0xff]
      %v1837 = vld [vmem:[%s1834 + $0x10] sm:$0xff]
      %v1838 = vld [vmem:[%s1834 + $0x18] sm:$0xff]
      %v1839 = vld [vmem:[%s1834 + $0x20] sm:$0xff]
      %v1840 = vld [vmem:[%s1834 + $0x28] sm:$0xff]
      %v1841 = vld [vmem:[%s1834 + $0x30] sm:$0xff]
      %v1842 = vld [vmem:[%s1834 + $0x38] sm:$0xff]
      %v1843 = vld [vmem:[%s1834 + $0x40] sm:$0xff]
      %v1844 = vld [vmem:[%s1834 + $0x48] sm:$0xff]
      %v1845 = vld [vmem:[%s1834 + $0x50] sm:$0xff]
      %v1846 = vld [vmem:[%s1834 + $0x58] sm:$0xff]
      %v1847 = vld [vmem:[%s1834 + $0x60] sm:$0xff]
      %v1848 = vld [vmem:[%s1834 + $0x68] sm:$0xff]
      %v1849 = vld [vmem:[%s1834 + $0x70] sm:$0xff]
      %v1850 = vld [vmem:[%s1834 + $0x78] sm:$0xff]
      %s1851 = scalar_lea.vmem %s223, 28
      %v1852 = vld [vmem:[%s1851] sm:$0xf]
      %v1854 = vsel %vm279, %v1835, 0
      %v1857 = vsel %vm279, %v1836, 0
      %v1860 = vsel %vm279, %v1837, 0
      %v1863 = vsel %vm279, %v1838, 0
      %v1866 = vsel %vm279, %v1839, 0
      %v1869 = vsel %vm279, %v1840, 0
      %v1872 = vsel %vm279, %v1841, 0
      %v1875 = vsel %vm279, %v1842, 0
      %v1878 = vsel %vm279, %v1843, 0
      %v1881 = vsel %vm279, %v1844, 0
      %v1884 = vsel %vm279, %v1845, 0
      %v1887 = vsel %vm279, %v1846, 0
      %v1890 = vsel %vm279, %v1847, 0
      %v1893 = vsel %vm279, %v1848, 0
      %v1896 = vsel %vm279, %v1849, 0
      %v1899 = vsel %vm279, %v1850, 0
      %v1902 = vsel %vm328, %v1852, 0
      %1904 = vmatprep.subr.mxu0 0.0
      %1905 = vmatpush1.msra.mxu0 %v1902
      %1906 = vmatprep.subr.mxu0 0.0
      %1907 = vmatpush1.msra.mxu0 0.0
      %1908 = vmatprep.subr.mxu0 0.0
      %1909 = vmatpush1.msra.mxu0 0.0
      %1910 = vmatprep.subr.mxu0 0.0
      %1911 = vmatpush1.msra.mxu0 0.0
      %1912 = vmatprep.subr.mxu0 0.0
      %1913 = vmatpush1.msra.mxu0 0.0
      %1914 = vmatprep.subr.mxu0 0.0
      %1915 = vmatpush1.msra.mxu0 0.0
      %1916 = vmatprep.subr.mxu0 0.0
      %1917 = vmatpush1.msra.mxu0 0.0
      %1918 = vmatprep.subr.mxu0 0.0
      %1919 = vmatpush1.msra.mxu0 0.0
      %1920 = vmatprep.subr.mxu0 0.0
      %1921 = vmatpush1.msra.mxu0 0.0
      %1922 = vmatprep.subr.mxu0 0.0
      %1923 = vmatpush1.msra.mxu0 0.0
      %1924 = vmatprep.subr.mxu0 0.0
      %1925 = vmatpush1.msra.mxu0 0.0
      %1926 = vmatprep.subr.mxu0 0.0
      %1927 = vmatpush1.msra.mxu0 0.0
      %1928 = vmatprep.subr.mxu0 0.0
      %1929 = vmatpush1.msra.mxu0 0.0
      %1930 = vmatprep.subr.mxu0 0.0
      %1931 = vmatpush1.msra.mxu0 0.0
      %1932 = vmatprep.subr.mxu0 0.0
      %1933 = vmatpush1.msra.mxu0 0.0
      %1934 = vmatprep.subr.mxu0 0.0
      %1935 = vmatpush1.msra.mxu0 0.0
      %1936 = vmatprep.subr.mxu0 0.0
      %1937 = vmatpush1.msra.mxu0 0.0
      %1938 = vmatprep.subr.mxu0 0.0
      %1939 = vmatpush1.msra.mxu0 0.0
      %1940 = vmatprep.subr.mxu0 0.0
      %1941 = vmatpush1.msra.mxu0 0.0
      %1942 = vmatprep.subr.mxu0 0.0
      %1943 = vmatpush1.msra.mxu0 0.0
      %1944 = vmatprep.subr.mxu0 0.0
      %1945 = vmatpush1.msra.mxu0 0.0
      %1946 = vmatprep.subr.mxu0 0.0
      %1947 = vmatpush1.msra.mxu0 0.0
      %1948 = vmatprep.subr.mxu0 0.0
      %1949 = vmatpush1.msra.mxu0 0.0
      %1950 = vmatprep.subr.mxu0 0.0
      %1951 = vmatpush1.msra.mxu0 0.0
      %1952 = vmatprep.subr.mxu0 0.0
      %1953 = vmatpush1.msra.mxu0 0.0
      %1954 = vmatprep.subr.mxu0 0.0
      %1955 = vmatpush1.msra.mxu0 0.0
      %1956 = vmatprep.subr.mxu0 0.0
      %1957 = vmatpush1.msra.mxu0 0.0
      %1958 = vmatprep.subr.mxu0 0.0
      %1959 = vmatpush1.msra.mxu0 0.0
      %1960 = vmatprep.subr.mxu0 0.0
      %1961 = vmatpush1.msra.mxu0 0.0
      %1962 = vmatprep.subr.mxu0 0.0
      %1963 = vmatpush1.msra.mxu0 0.0
      %1964 = vmatprep.subr.mxu0 0.0
      %1965 = vmatpush1.msra.mxu0 0.0
      %1966 = vmatprep.subr.mxu0 0.0
      %1967 = vmatpush1.msra.mxu0 0.0
      %1968 = vmatprep.mubr.f32.mxu0 0.0
      %1969 = vmatmul.mubr.f32.gmra.mrb[0].mxu0 %v1854
      %v1970 = vpop.f32.mrb[0].mxu0
      %v1971 = vadd.f32 0.0, %v1970
      %v1972 = vpop.f32.mrb[0].mxu0
      %1973 = vmatprep.mubr.f32.mxu0 0.0
      %1974 = vmatmul.mubr.f32.gmra.mrb[0].mxu0 %v1857
      %v1975 = vpop.f32.mrb[0].mxu0
      %v1976 = vadd.f32 0.0, %v1975
      %v1977 = vpop.f32.mrb[0].mxu0
      %1978 = vmatprep.mubr.f32.mxu0 0.0
      %1979 = vmatmul.mubr.f32.gmra.mrb[0].mxu0 %v1860
      %v1980 = vpop.f32.mrb[0].mxu0
      %v1981 = vadd.f32 0.0, %v1980
      %v1982 = vpop.f32.mrb[0].mxu0
      %1983 = vmatprep.mubr.f32.mxu0 0.0
      %1984 = vmatmul.mubr.f32.gmra.mrb[0].mxu0 %v1863
      %v1985 = vpop.f32.mrb[0].mxu0
      %v1986 = vadd.f32 0.0, %v1985
      %v1987 = vpop.f32.mrb[0].mxu0
      %1988 = vmatprep.mubr.f32.mxu0 0.0
      %1989 = vmatmul.mubr.f32.gmra.mrb[0].mxu0 %v1866
      %v1990 = vpop.f32.mrb[0].mxu0
      %v1991 = vadd.f32 0.0, %v1990
      %v1992 = vpop.f32.mrb[0].mxu0
      %1993 = vmatprep.mubr.f32.mxu0 0.0
      %1994 = vmatmul.mubr.f32.gmra.mrb[0].mxu0 %v1869
      %v1995 = vpop.f32.mrb[0].mxu0
      %v1996 = vadd.f32 0.0, %v1995
      %v1997 = vpop.f32.mrb[0].mxu0
      %1998 = vmatprep.mubr.f32.mxu0 0.0
      %1999 = vmatmul.mubr.f32.gmra.mrb[0].mxu0 %v1872
      %v2000 = vpop.f32.mrb[0].mxu0
      %v2001 = vadd.f32 0.0, %v2000
      %v2002 = vpop.f32.mrb[0].mxu0
      %2003 = vmatprep.mubr.f32.mxu0 0.0
      %2004 = vmatmul.mubr.f32.gmra.mrb[0].mxu0 %v1875
      %v2005 = vpop.f32.mrb[0].mxu0
      %v2006 = vadd.f32 0.0, %v2005
      %v2007 = vpop.f32.mrb[0].mxu0
      %2008 = vmatprep.mubr.f32.mxu0 0.0
      %2009 = vmatmul.mubr.f32.gmra.mrb[0].mxu0 %v1878
      %v2010 = vpop.f32.mrb[0].mxu0
      %v2011 = vadd.f32 0.0, %v2010
      %v2012 = vpop.f32.mrb[0].mxu0
      %2013 = vmatprep.mubr.f32.mxu0 0.0
      %2014 = vmatmul.mubr.f32.gmra.mrb[0].mxu0 %v1881
      %v2015 = vpop.f32.mrb[0].mxu0
      %v2016 = vadd.f32 0.0, %v2015
      %v2017 = vpop.f32.mrb[0].mxu0
      %2018 = vmatprep.mubr.f32.mxu0 0.0
      %2019 = vmatmul.mubr.f32.gmra.mrb[0].mxu0 %v1884
      %v2020 = vpop.f32.mrb[0].mxu0
      %v2021 = vadd.f32 0.0, %v2020
      %v2022 = vpop.f32.mrb[0].mxu0
      %2023 = vmatprep.mubr.f32.mxu0 0.0
      %2024 = vmatmul.mubr.f32.gmra.mrb[0].mxu0 %v1887
      %v2025 = vpop.f32.mrb[0].mxu0
      %v2026 = vadd.f32 0.0, %v2025
      %v2027 = vpop.f32.mrb[0].mxu0
      %2028 = vmatprep.mubr.f32.mxu0 0.0
      %2029 = vmatmul.mubr.f32.gmra.mrb[0].mxu0 %v1890
      %v2030 = vpop.f32.mrb[0].mxu0
      %v2031 = vadd.f32 0.0, %v2030
      %v2032 = vpop.f32.mrb[0].mxu0
      %2033 = vmatprep.mubr.f32.mxu0 0.0
      %2034 = vmatmul.mubr.f32.gmra.mrb[0].mxu0 %v1893
      %v2035 = vpop.f32.mrb[0].mxu0
      %v2036 = vadd.f32 0.0, %v2035
      %v2037 = vpop.f32.mrb[0].mxu0
      %2038 = vmatprep.mubr.f32.mxu0 0.0
      %2039 = vmatmul.mubr.f32.gmra.mrb[0].mxu0 %v1896
      %v2040 = vpop.f32.mrb[0].mxu0
      %v2041 = vadd.f32 0.0, %v2040
      %v2042 = vpop.f32.mrb[0].mxu0
      %2043 = vmatprep.mubr.f32.mxu0 0.0
      %2044 = vmatmul.mubr.f32.gmra.mrb[0].mxu0 %v1899
      %v2045 = vpop.f32.mrb[0].mxu0
      %v2046 = vadd.f32 0.0, %v2045
      %v2047 = vpop.f32.mrb[0].mxu0
      %2048 = vdwg.mxu0
      %v2049 = vadd.f32 %v1817, %v1971
      %v2050 = vadd.f32 %v1818, %v1976
      %v2051 = vadd.f32 %v1819, %v1981
      %v2052 = vadd.f32 %v1820, %v1986
      %v2053 = vadd.f32 %v1821, %v1991
      %v2054 = vadd.f32 %v1822, %v1996
      %v2055 = vadd.f32 %v1823, %v2001
      %v2056 = vadd.f32 %v1824, %v2006
      %v2057 = vadd.f32 %v1825, %v2011
      %v2058 = vadd.f32 %v1826, %v2016
      %v2059 = vadd.f32 %v1827, %v2021
      %v2060 = vadd.f32 %v1828, %v2026
      %v2061 = vadd.f32 %v1829, %v2031
      %v2062 = vadd.f32 %v1830, %v2036
      %v2063 = vadd.f32 %v1831, %v2041
      %v2064 = vadd.f32 %v1832, %v2046
      %s2065 = sadd.s32 %s240, 50
      %s2066 = scalar_lea.vmem %s219, %s2065
      %v2067 = vld [vmem:[%s2066] sm:$0xff]
      %v2068 = vld [vmem:[%s2066 + $0x8] sm:$0xff]
      %v2069 = vld [vmem:[%s2066 + $0x10] sm:$0xff]
      %v2070 = vld [vmem:[%s2066 + $0x18] sm:$0xff]
      %v2071 = vld [vmem:[%s2066 + $0x20] sm:$0xff]
      %v2072 = vld [vmem:[%s2066 + $0x28] sm:$0xff]
      %v2073 = vld [vmem:[%s2066 + $0x30] sm:$0xff]
      %v2074 = vld [vmem:[%s2066 + $0x38] sm:$0xff]
      %v2075 = vld [vmem:[%s2066 + $0x40] sm:$0xff]
      %v2076 = vld [vmem:[%s2066 + $0x48] sm:$0xff]
      %v2077 = vld [vmem:[%s2066 + $0x50] sm:$0xff]
      %v2078 = vld [vmem:[%s2066 + $0x58] sm:$0xff]
      %v2079 = vld [vmem:[%s2066 + $0x60] sm:$0xff]
      %v2080 = vld [vmem:[%s2066 + $0x68] sm:$0xff]
      %v2081 = vld [vmem:[%s2066 + $0x70] sm:$0xff]
      %v2082 = vld [vmem:[%s2066 + $0x78] sm:$0xff]
      %s2083 = scalar_lea.vmem %s223, 32
      %v2084 = vld [vmem:[%s2083] sm:$0xf]
      %v2086 = vsel %vm279, %v2067, 0
      %v2089 = vsel %vm279, %v2068, 0
      %v2092 = vsel %vm279, %v2069, 0
      %v2095 = vsel %vm279, %v2070, 0
      %v2098 = vsel %vm279, %v2071, 0
      %v2101 = vsel %vm279, %v2072, 0
      %v2104 = vsel %vm279, %v2073, 0
      %v2107 = vsel %vm279, %v2074, 0
      %v2110 = vsel %vm279, %v2075, 0
      %v2113 = vsel %vm279, %v2076, 0
      %v2116 = vsel %vm279, %v2077, 0
      %v2119 = vsel %vm279, %v2078, 0
      %v2122 = vsel %vm279, %v2079, 0
      %v2125 = vsel %vm279, %v2080, 0
      %v2128 = vsel %vm279, %v2081, 0
      %v2131 = vsel %vm279, %v2082, 0
      %v2134 = vsel %vm328, %v2084, 0
      %2136 = vmatprep.subr.mxu0 0.0
      %2137 = vmatpush1.msra.mxu0 %v2134
      %2138 = vmatprep.subr.mxu0 0.0
      %2139 = vmatpush1.msra.mxu0 0.0
      %2140 = vmatprep.subr.mxu0 0.0
      %2141 = vmatpush1.msra.mxu0 0.0
      %2142 = vmatprep.subr.mxu0 0.0
      %2143 = vmatpush1.msra.mxu0 0.0
      %2144 = vmatprep.subr.mxu0 0.0
      %2145 = vmatpush1.msra.mxu0 0.0
      %2146 = vmatprep.subr.mxu0 0.0
      %2147 = vmatpush1.msra.mxu0 0.0
      %2148 = vmatprep.subr.mxu0 0.0
      %2149 = vmatpush1.msra.mxu0 0.0
      %2150 = vmatprep.subr.mxu0 0.0
      %2151 = vmatpush1.msra.mxu0 0.0
      %2152 = vmatprep.subr.mxu0 0.0
      %2153 = vmatpush1.msra.mxu0 0.0
      %2154 = vmatprep.subr.mxu0 0.0
      %2155 = vmatpush1.msra.mxu0 0.0
      %2156 = vmatprep.subr.mxu0 0.0
      %2157 = vmatpush1.msra.mxu0 0.0
      %2158 = vmatprep.subr.mxu0 0.0
      %2159 = vmatpush1.msra.mxu0 0.0
      %2160 = vmatprep.subr.mxu0 0.0
      %2161 = vmatpush1.msra.mxu0 0.0
      %2162 = vmatprep.subr.mxu0 0.0
      %2163 = vmatpush1.msra.mxu0 0.0
      %2164 = vmatprep.subr.mxu0 0.0
      %2165 = vmatpush1.msra.mxu0 0.0
      %2166 = vmatprep.subr.mxu0 0.0
      %2167 = vmatpush1.msra.mxu0 0.0
      %2168 = vmatprep.subr.mxu0 0.0
      %2169 = vmatpush1.msra.mxu0 0.0
      %2170 = vmatprep.subr.mxu0 0.0
      %2171 = vmatpush1.msra.mxu0 0.0
      %2172 = vmatprep.subr.mxu0 0.0
      %2173 = vmatpush1.msra.mxu0 0.0
      %2174 = vmatprep.subr.mxu0 0.0
      %2175 = vmatpush1.msra.mxu0 0.0
      %2176 = vmatprep.subr.mxu0 0.0
      %2177 = vmatpush1.msra.mxu0 0.0
      %2178 = vmatprep.subr.mxu0 0.0
      %2179 = vmatpush1.msra.mxu0 0.0
      %2180 = vmatprep.subr.mxu0 0.0
      %2181 = vmatpush1.msra.mxu0 0.0
      %2182 = vmatprep.subr.mxu0 0.0
      %2183 = vmatpush1.msra.mxu0 0.0
      %2184 = vmatprep.subr.mxu0 0.0
      %2185 = vmatpush1.msra.mxu0 0.0
      %2186 = vmatprep.subr.mxu0 0.0
      %2187 = vmatpush1.msra.mxu0 0.0
      %2188 = vmatprep.subr.mxu0 0.0
      %2189 = vmatpush1.msra.mxu0 0.0
      %2190 = vmatprep.subr.mxu0 0.0
      %2191 = vmatpush1.msra.mxu0 0.0
      %2192 = vmatprep.subr.mxu0 0.0
      %2193 = vmatpush1.msra.mxu0 0.0
      %2194 = vmatprep.subr.mxu0 0.0
      %2195 = vmatpush1.msra.mxu0 0.0
      %2196 = vmatprep.subr.mxu0 0.0
      %2197 = vmatpush1.msra.mxu0 0.0
      %2198 = vmatprep.subr.mxu0 0.0
      %2199 = vmatpush1.msra.mxu0 0.0
      %2200 = vmatprep.mubr.f32.mxu0 0.0
      %2201 = vmatmul.mubr.f32.gmra.mrb[0].mxu0 %v2086
      %v2202 = vpop.f32.mrb[0].mxu0
      %v2203 = vadd.f32 0.0, %v2202
      %v2204 = vpop.f32.mrb[0].mxu0
      %2205 = vmatprep.mubr.f32.mxu0 0.0
      %2206 = vmatmul.mubr.f32.gmra.mrb[0].mxu0 %v2089
      %v2207 = vpop.f32.mrb[0].mxu0
      %v2208 = vadd.f32 0.0, %v2207
      %v2209 = vpop.f32.mrb[0].mxu0
      %2210 = vmatprep.mubr.f32.mxu0 0.0
      %2211 = vmatmul.mubr.f32.gmra.mrb[0].mxu0 %v2092
      %v2212 = vpop.f32.mrb[0].mxu0
      %v2213 = vadd.f32 0.0, %v2212
      %v2214 = vpop.f32.mrb[0].mxu0
      %2215 = vmatprep.mubr.f32.mxu0 0.0
      %2216 = vmatmul.mubr.f32.gmra.mrb[0].mxu0 %v2095
      %v2217 = vpop.f32.mrb[0].mxu0
      %v2218 = vadd.f32 0.0, %v2217
      %v2219 = vpop.f32.mrb[0].mxu0
      %2220 = vmatprep.mubr.f32.mxu0 0.0
      %2221 = vmatmul.mubr.f32.gmra.mrb[0].mxu0 %v2098
      %v2222 = vpop.f32.mrb[0].mxu0
      %v2223 = vadd.f32 0.0, %v2222
      %v2224 = vpop.f32.mrb[0].mxu0
      %2225 = vmatprep.mubr.f32.mxu0 0.0
      %2226 = vmatmul.mubr.f32.gmra.mrb[0].mxu0 %v2101
      %v2227 = vpop.f32.mrb[0].mxu0
      %v2228 = vadd.f32 0.0, %v2227
      %v2229 = vpop.f32.mrb[0].mxu0
      %2230 = vmatprep.mubr.f32.mxu0 0.0
      %2231 = vmatmul.mubr.f32.gmra.mrb[0].mxu0 %v2104
      %v2232 = vpop.f32.mrb[0].mxu0
      %v2233 = vadd.f32 0.0, %v2232
      %v2234 = vpop.f32.mrb[0].mxu0
      %2235 = vmatprep.mubr.f32.mxu0 0.0
      %2236 = vmatmul.mubr.f32.gmra.mrb[0].mxu0 %v2107
      %v2237 = vpop.f32.mrb[0].mxu0
      %v2238 = vadd.f32 0.0, %v2237
      %v2239 = vpop.f32.mrb[0].mxu0
      %2240 = vmatprep.mubr.f32.mxu0 0.0
      %2241 = vmatmul.mubr.f32.gmra.mrb[0].mxu0 %v2110
      %v2242 = vpop.f32.mrb[0].mxu0
      %v2243 = vadd.f32 0.0, %v2242
      %v2244 = vpop.f32.mrb[0].mxu0
      %2245 = vmatprep.mubr.f32.mxu0 0.0
      %2246 = vmatmul.mubr.f32.gmra.mrb[0].mxu0 %v2113
      %v2247 = vpop.f32.mrb[0].mxu0
      %v2248 = vadd.f32 0.0, %v2247
      %v2249 = vpop.f32.mrb[0].mxu0
      %2250 = vmatprep.mubr.f32.mxu0 0.0
      %2251 = vmatmul.mubr.f32.gmra.mrb[0].mxu0 %v2116
      %v2252 = vpop.f32.mrb[0].mxu0
      %v2253 = vadd.f32 0.0, %v2252
      %v2254 = vpop.f32.mrb[0].mxu0
      %2255 = vmatprep.mubr.f32.mxu0 0.0
      %2256 = vmatmul.mubr.f32.gmra.mrb[0].mxu0 %v2119
      %v2257 = vpop.f32.mrb[0].mxu0
      %v2258 = vadd.f32 0.0, %v2257
      %v2259 = vpop.f32.mrb[0].mxu0
      %2260 = vmatprep.mubr.f32.mxu0 0.0
      %2261 = vmatmul.mubr.f32.gmra.mrb[0].mxu0 %v2122
      %v2262 = vpop.f32.mrb[0].mxu0
      %v2263 = vadd.f32 0.0, %v2262
      %v2264 = vpop.f32.mrb[0].mxu0
      %2265 = vmatprep.mubr.f32.mxu0 0.0
      %2266 = vmatmul.mubr.f32.gmra.mrb[0].mxu0 %v2125
      %v2267 = vpop.f32.mrb[0].mxu0
      %v2268 = vadd.f32 0.0, %v2267
      %v2269 = vpop.f32.mrb[0].mxu0
      %2270 = vmatprep.mubr.f32.mxu0 0.0
      %2271 = vmatmul.mubr.f32.gmra.mrb[0].mxu0 %v2128
      %v2272 = vpop.f32.mrb[0].mxu0
      %v2273 = vadd.f32 0.0, %v2272
      %v2274 = vpop.f32.mrb[0].mxu0
      %2275 = vmatprep.mubr.f32.mxu0 0.0
      %2276 = vmatmul.mubr.f32.gmra.mrb[0].mxu0 %v2131
      %v2277 = vpop.f32.mrb[0].mxu0
      %v2278 = vadd.f32 0.0, %v2277
      %v2279 = vpop.f32.mrb[0].mxu0
      %2280 = vdwg.mxu0
      %v2281 = vadd.f32 %v2049, %v2203
      %v2282 = vadd.f32 %v2050, %v2208
      %v2283 = vadd.f32 %v2051, %v2213
      %v2284 = vadd.f32 %v2052, %v2218
      %v2285 = vadd.f32 %v2053, %v2223
      %v2286 = vadd.f32 %v2054, %v2228
      %v2287 = vadd.f32 %v2055, %v2233
      %v2288 = vadd.f32 %v2056, %v2238
      %v2289 = vadd.f32 %v2057, %v2243
      %v2290 = vadd.f32 %v2058, %v2248
      %v2291 = vadd.f32 %v2059, %v2253
      %v2292 = vadd.f32 %v2060, %v2258
      %v2293 = vadd.f32 %v2061, %v2263
      %v2294 = vadd.f32 %v2062, %v2268
      %v2295 = vadd.f32 %v2063, %v2273
      %v2296 = vadd.f32 %v2064, %v2278
      %v2297 = vld [vmem:[%s226] sm:$0x1]
      %v2299 = vlaneseq
      %v2300 = vshrl.u32 %v2299, 7
      %v2301 = vsub.s32 0, %v2300
      %v2302 = vrot.slane %v2297, %v2301
      %v2304 = vadd.f32 %v2281, %v2302
      %v2305 = vadd.f32 %v2282, %v2302
      %v2306 = vadd.f32 %v2283, %v2302
      %v2307 = vadd.f32 %v2284, %v2302
      %v2308 = vadd.f32 %v2285, %v2302
      %v2309 = vadd.f32 %v2286, %v2302
      %v2310 = vadd.f32 %v2287, %v2302
      %v2311 = vadd.f32 %v2288, %v2302
      %v2312 = vadd.f32 %v2289, %v2302
      %v2313 = vadd.f32 %v2290, %v2302
      %v2314 = vadd.f32 %v2291, %v2302
      %v2315 = vadd.f32 %v2292, %v2302
      %v2316 = vadd.f32 %v2293, %v2302
      %v2317 = vadd.f32 %v2294, %v2302
      %v2318 = vadd.f32 %v2295, %v2302
      %v2319 = vadd.f32 %v2296, %v2302
      %v2320 = vmul.f32 %v2304, 0.5
      %v2321 = vmul.f32 %v2305, 0.5
      %v2322 = vmul.f32 %v2306, 0.5
      %v2323 = vmul.f32 %v2307, 0.5
      %v2324 = vmul.f32 %v2308, 0.5
      %v2325 = vmul.f32 %v2309, 0.5
      %v2326 = vmul.f32 %v2310, 0.5
      %v2327 = vmul.f32 %v2311, 0.5
      %v2328 = vmul.f32 %v2312, 0.5
      %v2329 = vmul.f32 %v2313, 0.5
      %v2330 = vmul.f32 %v2314, 0.5
      %v2331 = vmul.f32 %v2315, 0.5
      %v2332 = vmul.f32 %v2316, 0.5
      %v2333 = vmul.f32 %v2317, 0.5
      %v2334 = vmul.f32 %v2318, 0.5
      %v2335 = vmul.f32 %v2319, 0.5
      %v2336 = vtanh.pop %v2320
      %v2337 = vtanh.pop %v2321
      %v2338 = vtanh.pop %v2322
      %v2339 = vtanh.pop %v2323
      %v2340 = vtanh.pop %v2324
      %v2341 = vtanh.pop %v2325
      %v2342 = vtanh.pop %v2326
      %v2343 = vtanh.pop %v2327
      %v2344 = vtanh.pop %v2328
      %v2345 = vtanh.pop %v2329
      %v2346 = vtanh.pop %v2330
      %v2347 = vtanh.pop %v2331
      %v2348 = vtanh.pop %v2332
      %v2349 = vtanh.pop %v2333
      %v2350 = vtanh.pop %v2334
      %v2351 = vtanh.pop %v2335
      %v2352 = vadd.f32 %v2336, 1.0
      %v2353 = vadd.f32 %v2337, 1.0
      %v2354 = vadd.f32 %v2338, 1.0
      %v2355 = vadd.f32 %v2339, 1.0
      %v2356 = vadd.f32 %v2340, 1.0
      %v2357 = vadd.f32 %v2341, 1.0
      %v2358 = vadd.f32 %v2342, 1.0
      %v2359 = vadd.f32 %v2343, 1.0
      %v2360 = vadd.f32 %v2344, 1.0
      %v2361 = vadd.f32 %v2345, 1.0
      %v2362 = vadd.f32 %v2346, 1.0
      %v2363 = vadd.f32 %v2347, 1.0
      %v2364 = vadd.f32 %v2348, 1.0
      %v2365 = vadd.f32 %v2349, 1.0
      %v2366 = vadd.f32 %v2350, 1.0
      %v2367 = vadd.f32 %v2351, 1.0
      %v2368 = vmul.f32 %v2320, %v2352
      %v2369 = vmul.f32 %v2321, %v2353
      %v2370 = vmul.f32 %v2322, %v2354
      %v2371 = vmul.f32 %v2323, %v2355
      %v2372 = vmul.f32 %v2324, %v2356
      %v2373 = vmul.f32 %v2325, %v2357
      %v2374 = vmul.f32 %v2326, %v2358
      %v2375 = vmul.f32 %v2327, %v2359
      %v2376 = vmul.f32 %v2328, %v2360
      %v2377 = vmul.f32 %v2329, %v2361
      %v2378 = vmul.f32 %v2330, %v2362
      %v2379 = vmul.f32 %v2331, %v2363
      %v2380 = vmul.f32 %v2332, %v2364
      %v2381 = vmul.f32 %v2333, %v2365
      %v2382 = vmul.f32 %v2334, %v2366
      %v2383 = vmul.f32 %v2335, %v2367
      %vm2384 = vcmask 64512
      %2385 = vst.msk [vmem:[%s238] sm:$0xff] %vm2384, %v2368
      %2386 = vst.msk [vmem:[%s238 + $0x8] sm:$0xff] %vm2384, %v2369
      %2387 = vst.msk [vmem:[%s238 + $0x10] sm:$0xff] %vm2384, %v2370
      %2388 = vst.msk [vmem:[%s238 + $0x18] sm:$0xff] %vm2384, %v2371
      %2389 = vst.msk [vmem:[%s238 + $0x20] sm:$0xff] %vm2384, %v2372
      %2390 = vst.msk [vmem:[%s238 + $0x28] sm:$0xff] %vm2384, %v2373
      %2391 = vst.msk [vmem:[%s238 + $0x30] sm:$0xff] %vm2384, %v2374
      %2392 = vst.msk [vmem:[%s238 + $0x38] sm:$0xff] %vm2384, %v2375
      %2393 = vst.msk [vmem:[%s238 + $0x40] sm:$0xff] %vm2384, %v2376
      %2394 = vst.msk [vmem:[%s238 + $0x48] sm:$0xff] %vm2384, %v2377
      %2395 = vst.msk [vmem:[%s238 + $0x50] sm:$0xff] %vm2384, %v2378
      %2396 = vst.msk [vmem:[%s238 + $0x58] sm:$0xff] %vm2384, %v2379
      %2397 = vst.msk [vmem:[%s238 + $0x60] sm:$0xff] %vm2384, %v2380
      %2398 = vst.msk [vmem:[%s238 + $0x68] sm:$0xff] %vm2384, %v2381
      %2399 = vst.msk [vmem:[%s238 + $0x70] sm:$0xff] %vm2384, %v2382
      %2400 = vst.msk [vmem:[%s238 + $0x78] sm:$0xff] %vm2384, %v2383
      %s2401 = smul.u32 16, %s21
      %p2402 = scmp.lt.s32.totalorder %s19, 1
      %s2403 = scalar_select %p2402, %s19, 1
      %p2404 = scmp.lt.s32.totalorder %s2401, 47
      %s2405 = scalar_select %p2404, %s2401, 47
      %p2406 = scmp.lt.s32.totalorder %s20, 0
      %s2407 = scalar_select %p2406, %s20, 0
      %s2408 = sadd.s32 %s2407, %s2405
      %s2409 = smul.addr %s2403, 48
      %s2410 = sadd.s32 %s2408, %s2409
      %s2411 = smul.addr %s2410, 8
      %s2412 = scalar_lea.vmem %s3, %s2411
      // Predicated region
      $region33: #{tpu_custom_call.1} parent=31 // pred_check
        %p2413 = pneg %p133
      $region34: #{tpu_custom_call.1} parent=31 // pred_check_branch
        %2415 = sbr.rel (%p2413) target = $region36
      $region35: #{tpu_custom_call.1} parent=31 // pred_region
        %s2416 = smul.u32 16, %s21
      $region36: #{tpu_custom_call.1} parent=31 // pred_fallthru
        _
    $region32: #{tpu_custom_call.1} parent=5 // pred_fallthru
      _
    %p2417 = scmp.le.s32.totalorder 2, %s9
    // Predicated region
    $region37: #{tpu_custom_call.1} parent=5 // pred_check
      %p2418 = pneg %p2417
    $region38: #{tpu_custom_call.1} parent=5 // pred_check_branch
      %2420 = sbr.rel (%p2418) target = $region40
    $region39: #{tpu_custom_call.1} parent=5 // pred_region
      %s2421 = ssub.s32 %s9, 2
      // Predicated region
      $region41: #{tpu_custom_call.1} parent=39 // pred_check
        %p2422 = pneg %p139
      $region42: #{tpu_custom_call.1} parent=39 // pred_check_branch
        %2424 = sbr.rel (%p2422) target = $region44
      $region43: #{tpu_custom_call.1} parent=39 // pred_region
        %s2425 = smul.u32 16, %s24
        %p2426 = scmp.lt.s32.totalorder %s22, 1
        %s2427 = scalar_select %p2426, %s22, 1
        %p2428 = scmp.lt.s32.totalorder %s2425, 47
        %s2429 = scalar_select %p2428, %s2425, 47
        %p2430 = scmp.lt.s32.totalorder %s23, 0
        %s2431 = scalar_select %p2430, %s23, 0
        %s2432 = sadd.s32 %s2431, %s2429
        %s2433 = smul.addr %s2427, 48
        %s2434 = sadd.s32 %s2432, %s2433
        %s2435 = smul.addr %s2434, 8
        %s2436 = scalar_lea.vmem %s3, %s2435
      $region44: #{tpu_custom_call.1} parent=39 // pred_fallthru
        _
    $region40: #{tpu_custom_call.1} parent=5 // pred_fallthru
      _
  $region6: #{tpu_custom_call.1} parent=0 // loop_footer
    %s13 = sadd.s32 1, %s9
  $region7: #{tpu_custom_call.1} parent=0 // loop_footer_branch
    %8 = sbr.rel target = $region3
  $region8: #{tpu_custom_call.1} parent=0 // loop_exit
    _

</llo_original>
